<compile_context>
chip_gen: v7x
topology: tpu7x:2x2x1
jax: 0.10.0
libtpu: 0.0.40
codegen_flags: <defaults>
</compile_context>

<pallas_src>
import numpy as np
import jax
import jax.numpy as jnp
from jax.experimental import pallas as pl
from jax.experimental.pallas import tpu as pltpu

F32 = jnp.float32
BF16 = jnp.bfloat16

FEAT = 3           # logical node-feature dim (SAGEConv((3,3)), NNConv(3, ...))
FEAT_PAD = 8       # zero-padded feature dim per node type
HIDDEN = 32        # hidden_channels (kept small for the demo)
EDGE_MLP_H = 32    # width of the edge_nn hidden layer: Lin(1, 32)


# ---------------------------------------------------------------------------
# Packed-weight slab layout (host <-> kernel contract)
# ---------------------------------------------------------------------------
def misc_layout(hidden=HIDDEN):
    """Row/col offsets of every small weight / bias inside the single f32 slab."""
    fh = FEAT * hidden
    entries = [
        ('w2',     EDGE_MLP_H, fh),         # edge MLP Lin(32, 3H), flat f*H+h cols
        ('wro_g',  hidden, hidden),         # readout gene
        ('wro_c',  hidden, hidden),         # readout cell
        ('w1',     FEAT_PAD, EDGE_MLP_H),   # edge MLP Lin(1, 32), rows zero-padded
        ('b1',     1, EDGE_MLP_H),
        ('b2',     1, fh),
        ('bias_g', 1, 2 * hidden),          # (SAGE b_l + NNConv bias), dup pos|neg
        ('bias_c', 1, 2 * hidden),
        ('bro_g',  1, hidden),
        ('bro_c',  1, hidden),
    ]
    layout, r = {}, 0
    for name, nr, nc in entries:
        layout[name] = (r, r + nr, 0, nc)
        r += nr
    rows = ((r + 7) // 8) * 8
    width = 128
    assert fh <= width, "misc slab layout assumes 3*hidden <= 128"
    return layout, rows, width


# ---------------------------------------------------------------------------
# Fused kernel
# ---------------------------------------------------------------------------
def make_dgi_kernel(n_gene, n_cell, hidden, layout):
    H = hidden
    fh = FEAT * H
    NT = n_gene + n_cell

    def bdot(a, b):
        # bf16 MXU operands, f32 accumulation (cuts f32 MXU pass count ~3x).
        return jnp.dot(a.astype(BF16), b.astype(BF16), preferred_element_type=F32)

    def log_sigmoid(x):
        return jnp.minimum(x, 0.0) - jnp.log1p(jnp.exp(-jnp.abs(x)))

    def kernel(x_ref, p_ref, adj_ref, s_ref, a_ref, ea_ref, ws_ref, wm_ref, out_ref):
        def mw(name):
            r0, r1, c0, c1 = layout[name]
            return wm_ref[r0:r1, c0:c1]

        # --- in-kernel corruption: per-type row permutation via block-diag one-hot
        x_pos = x_ref[...]                          # (NT, 2*FEAT_PAD), type-tagged feats
        x_neg = bdot(p_ref[...], x_pos)             # exact permutation of bf16 values

        # --- fused per-type transforms, pos & neg batched in lanes
        # hh lanes: [lin_l pos | lin_l neg | self pos | self neg | rep pos | rep neg]
        hh = (bdot(x_pos, ws_ref[0:2 * FEAT_PAD, :])
              + bdot(x_neg, ws_ref[2 * FEAT_PAD:4 * FEAT_PAD, :]))     # (NT, 4H+2*3H)

        # --- shared edge MLP, run once for both relations (edge-attr only)
        he = jnp.maximum(bdot(ea_ref[...], mw('w1')) + mw('b1'), 0.0)  # (2E, 32)
        theta = bdot(he, mw('w2')) + mw('b2')                          # (2E, 3H)

        # --- SAGE neighbor aggregation for both node types (block-diag adjacency)
        agg = bdot(adj_ref[...], hh[:, 0:2 * H])                       # (NT, 2H)

        # --- NNConv messages: gather feature-replicated sources, FMA with Theta
        xj = bdot(s_ref[...], hh[:, 4 * H:4 * H + 2 * fh])             # (2E, 2*3H)
        pp = xj[:, 0:fh] * theta                                       # positive branch
        pn = xj[:, fh:2 * fh] * theta                                  # corrupted branch
        mp = pp[:, 0:H] + pp[:, H:2 * H] + pp[:, 2 * H:3 * H]
        mn = pn[:, 0:H] + pn[:, H:2 * H] + pn[:, 2 * H:3 * H]
        msg = jnp.concatenate([mp, mn], axis=1)                        # (2E, 2H)
        nn_agg = bdot(a_ref[...], msg)                                 # (NT, 2H)

        # --- HeteroConv(aggr='mean'): each dst node type receives exactly 2 relations
        z = agg + hh[:, 2 * H:4 * H] + nn_agg                          # (NT, 2H)
        zg = 0.5 * (z[0:n_gene, :] + mw('bias_g'))                     # (Ng, 2H)
        zc = 0.5 * (z[n_gene:NT, :] + mw('bias_c'))                    # (Nc, 2H)

        # --- DGI readout + logsigmoid loss (pos = lanes 0:H, neg = lanes H:2H)
        def dgi(zt, w_ro, b_ro, inv_n):
            pz, nz = zt[:, 0:H], zt[:, H:2 * H]
            summ = jnp.dot(jnp.sum(pz, axis=0, keepdims=True) * inv_n, w_ro,
                           preferred_element_type=F32) + b_ro          # (1, H)
            ps = jnp.sum(pz * summ, axis=1, keepdims=True)
            ns = jnp.sum(nz * summ, axis=1, keepdims=True)
            return (-jnp.mean(log_sigmoid(ps), axis=0, keepdims=True)
                    - jnp.mean(log_sigmoid(-ns), axis=0, keepdims=True))

        loss = (dgi(zg, mw('wro_g'), mw('bro_g'), 1.0 / n_gene)
                + dgi(zc, mw('wro_c'), mw('bro_c'), 1.0 / n_cell))      # (1, 1)

        # --- single output slab: [pos_z gene ; pos_z cell ; loss broadcast rows]
        out_ref[0:n_gene, :] = zg[:, 0:H]
        out_ref[n_gene:NT, :] = zc[:, 0:H]
        out_ref[NT:NT + 8, :] = loss + jnp.zeros((8, H), F32)

    return kernel


def build_fused_call(n_gene, n_cell, hidden=HIDDEN):
    layout, _, _ = misc_layout(hidden)
    kernel = make_dgi_kernel(n_gene, n_cell, hidden, layout)
    NT = n_gene + n_cell

    def vspec():
        return pl.BlockSpec(memory_space=pltpu.MemorySpace.VMEM)

    return pl.pallas_call(
        kernel,
        out_shape=jax.ShapeDtypeStruct((NT + 8, hidden), F32),
        in_specs=[vspec() for _ in range(8)],
        out_specs=vspec(),
    )


# ---------------------------------------------------------------------------
# Parameters (init + one-time host packing into two slabs)
# ---------------------------------------------------------------------------
def init_params(key, hidden=HIDDEN):
    ks = jax.random.split(key, 18)

    def w(k, shape, scale=0.1):
        return scale * jax.random.normal(k, shape, dtype=F32)

    return {
        'sage_gene': {'w_l': w(ks[0], (FEAT, hidden)), 'b_l': w(ks[1], (hidden,)),
                      'w_r': w(ks[2], (FEAT, hidden))},
        'sage_cell': {'w_l': w(ks[3], (FEAT, hidden)), 'b_l': w(ks[4], (hidden,)),
                      'w_r': w(ks[5], (FEAT, hidden))},
        # edge_nn is one Sequential shared by both NNConv relations.
        'edge_nn': {'w1': w(ks[6], (1, EDGE_MLP_H)), 'b1': w(ks[7], (EDGE_MLP_H,)),
                    'w2': w(ks[8], (EDGE_MLP_H, FEAT * hidden)),
                    'b2': w(ks[9], (FEAT * hidden,))},
        'nn_expresses': {'w_root': w(ks[10], (FEAT, hidden)), 'bias': w(ks[11], (hidden,))},
        'nn_expressed_in': {'w_root': w(ks[12], (FEAT, hidden)), 'bias': w(ks[13], (hidden,))},
        'readout': {'gene': {'w': w(ks[14], (hidden, hidden)), 'b': w(ks[15], (hidden,))},
                    'cell': {'w': w(ks[16], (hidden, hidden)), 'b': w(ks[17], (hidden,))}},
    }


def _pad_rows(a, to=FEAT_PAD):
    a = np.asarray(a, np.float32)
    out = np.zeros((to, a.shape[1]), np.float32)
    out[:a.shape[0]] = a
    return out


def prepare_params(params, hidden=HIDDEN):
    """One-time host packing: every weight lands in exactly two VMEM slabs."""
    H = hidden
    fh = FEAT * H
    p = params

    wl_g = _pad_rows(p['sage_gene']['w_l'])
    wl_c = _pad_rows(p['sage_cell']['w_l'])
    # SAGE lin_r and NNConv root both multiply the dst node's own features and
    # their outputs are summed -> fold into one "self" weight per node type.
    self_g = _pad_rows(np.asarray(p['sage_gene']['w_r'], np.float32)
                       + np.asarray(p['nn_expresses']['w_root'], np.float32))
    self_c = _pad_rows(np.asarray(p['sage_cell']['w_r'], np.float32)
                       + np.asarray(p['nn_expressed_in']['w_root'], np.float32))

    # Replication matrix: raw feature f -> lanes [f*H, (f+1)*H) so NNConv
    # messages are plain full-vreg FMAs against the (flat) edge Theta.
    rep = np.zeros((FEAT_PAD, fh), np.float32)
    for f in range(FEAT):
        rep[f, f * H:(f + 1) * H] = 1.0

    # w_stack rows: [pos-gene feats | pos-cell feats | neg-gene feats | neg-cell feats]
    # w_stack lanes: [lin_l pos | lin_l neg | self pos | self neg | rep pos | rep neg]
    ws = np.zeros((4 * FEAT_PAD, 4 * H + 2 * fh), np.float32)
    blocks = [
        (0 * FEAT_PAD, wl_g, self_g, 0, 2 * H, 4 * H),            # positive gene
        (1 * FEAT_PAD, wl_c, self_c, 0, 2 * H, 4 * H),            # positive cell
        (2 * FEAT_PAD, wl_g, self_g, H, 3 * H, 4 * H + fh),       # corrupted gene
        (3 * FEAT_PAD, wl_c, self_c, H, 3 * H, 4 * H + fh),       # corrupted cell
    ]
    for r0, lin_w, self_w, c_lin, c_self, c_rep in blocks:
        ws[r0:r0 + FEAT_PAD, c_lin:c_lin + H] = lin_w
        ws[r0:r0 + FEAT_PAD, c_self:c_self + H] = self_w
        ws[r0:r0 + FEAT_PAD, c_rep:c_rep + fh] = rep

    layout, rows, width = misc_layout(hidden)
    slab = np.zeros((rows, width), np.float32)

    def put(name, val):
        r0, r1, c0, c1 = layout[name]
        slab[r0:r1, c0:c1] = np.asarray(val, np.float32).reshape(r1 - r0, c1 - c0)

    bias_g = (np.asarray(p['sage_gene']['b_l'], np.float32)
              + np.asarray(p['nn_expresses']['bias'], np.float32))
    bias_c = (np.asarray(p['sage_cell']['b_l'], np.float32)
              + np.asarray(p['nn_expressed_in']['bias'], np.float32))

    put('w2', p['edge_nn']['w2'])                 # flat (f*H + h) column order
    put('wro_g', p['readout']['gene']['w'])
    put('wro_c', p['readout']['cell']['w'])
    put('w1', _pad_rows(p['edge_nn']['w1']))
    put('b1', p['edge_nn']['b1'])
    put('b2', p['edge_nn']['b2'])
    put('bias_g', np.concatenate([bias_g, bias_g]))
    put('bias_c', np.concatenate([bias_c, bias_c]))
    put('bro_g', p['readout']['gene']['b'])
    put('bro_c', p['readout']['cell']['b'])

    return {'w_stack': jnp.asarray(ws, BF16), 'w_misc': jnp.asarray(slab, F32)}


# ---------------------------------------------------------------------------
# Graph preprocessing (one-time, outside the hot path)
# ---------------------------------------------------------------------------
def _round_up(x, m=8):
    return ((x + m - 1) // m) * m


def _gather_matrix(src_idx, n_src, e_pad):
    src_idx = np.asarray(src_idx)
    s = np.zeros((e_pad, n_src), np.float32)
    s[np.arange(src_idx.shape[0]), src_idx] = 1.0
    return s


def _mean_aggr_matrix(dst_idx, n_dst, e_pad):
    # deg clamped to >= 1 so zero-in-degree nodes get 0, matching PyG scatter-mean.
    dst_idx = np.asarray(dst_idx)
    a = np.zeros((n_dst, e_pad), np.float32)
    a[dst_idx, np.arange(dst_idx.shape[0])] = 1.0
    deg = np.maximum(a.sum(axis=1, keepdims=True), 1.0)
    return a / deg


def build_graph(ei_gg, ei_cc, ei_cg, ei_gc, ea_cg, ea_gc, n_gene, n_cell):
    """Fold the 4 relations into block-structured dense matrices (one-time prep)."""
    ei_gg, ei_cc = np.asarray(ei_gg), np.asarray(ei_cc)
    ei_cg, ei_gc = np.asarray(ei_cg), np.asarray(ei_gc)
    ea_cg, ea_gc = np.asarray(ea_cg, np.float32), np.asarray(ea_gc, np.float32)
    nt = n_gene + n_cell
    e_cg, e_gc = ei_cg.shape[1], ei_gc.shape[1]
    e_pad = _round_up(max(e_cg, e_gc))

    adj_gg = (_mean_aggr_matrix(ei_gg[1], n_gene, ei_gg.shape[1])
              @ _gather_matrix(ei_gg[0], n_gene, ei_gg.shape[1]))
    adj_cc = (_mean_aggr_matrix(ei_cc[1], n_cell, ei_cc.shape[1])
              @ _gather_matrix(ei_cc[0], n_cell, ei_cc.shape[1]))
    adj_blk = np.zeros((nt, nt), np.float32)
    adj_blk[:n_gene, :n_gene] = adj_gg
    adj_blk[n_gene:, n_gene:] = adj_cc

    s_blk = np.zeros((2 * e_pad, nt), np.float32)               # per-edge src gather
    s_blk[:e_pad, n_gene:] = _gather_matrix(ei_cg[0], n_cell, e_pad)   # src: cell
    s_blk[e_pad:, :n_gene] = _gather_matrix(ei_gc[0], n_gene, e_pad)   # src: gene

    a_blk = np.zeros((nt, 2 * e_pad), np.float32)               # per-dst mean scatter
    a_blk[:n_gene, :e_pad] = _mean_aggr_matrix(ei_cg[1], n_gene, e_pad)  # dst: gene
    a_blk[n_gene:, e_pad:] = _mean_aggr_matrix(ei_gc[1], n_cell, e_pad)  # dst: cell

    ea = np.zeros((2 * e_pad, FEAT_PAD), np.float32)
    ea[:e_cg, :ea_cg.shape[1]] = ea_cg
    ea[e_pad:e_pad + e_gc, :ea_gc.shape[1]] = ea_gc

    return {'adj_blk': jnp.asarray(adj_blk, BF16),
            's_blk': jnp.asarray(s_blk, BF16),
            'a_blk': jnp.asarray(a_blk, BF16),
            'ea': jnp.asarray(ea, BF16)}


def build_x_tag(x_gene, x_cell):
    """Type-tagged node features: gene feats in lanes 0:8, cell feats in lanes 8:16."""
    x_gene = np.asarray(x_gene, np.float32)
    x_cell = np.asarray(x_cell, np.float32)
    n_gene, n_cell = x_gene.shape[0], x_cell.shape[0]
    xt = np.zeros((n_gene + n_cell, 2 * FEAT_PAD), np.float32)
    xt[:n_gene, 0:x_gene.shape[1]] = x_gene
    xt[n_gene:, FEAT_PAD:FEAT_PAD + x_cell.shape[1]] = x_cell
    return jnp.asarray(xt, BF16)


# ---------------------------------------------------------------------------
# Forward (single pallas_call; positive + corrupted passes fused)
# ---------------------------------------------------------------------------
def dgi_hetero_forward(x_tag, graph, prepared, corruption_key, call, n_gene, n_cell):
    nt = n_gene + n_cell
    kg, kc = jax.random.split(corruption_key)
    # corruption = per-node-type row permutation (torch.randperm); applied inside
    # the kernel via a block-diagonal one-hot matrix on the existing matmul path.
    pg = jax.nn.one_hot(jax.random.permutation(kg, n_gene), n_gene, dtype=BF16)
    pc = jax.nn.one_hot(jax.random.permutation(kc, n_cell), n_cell, dtype=BF16)
    p_all = jnp.zeros((nt, nt), BF16)
    p_all = p_all.at[:n_gene, :n_gene].set(pg)
    p_all = p_all.at[n_gene:, n_gene:].set(pc)

    out = call(x_tag, p_all, graph['adj_blk'], graph['s_blk'], graph['a_blk'],
               graph['ea'], prepared['w_stack'], prepared['w_misc'])
    loss = out[nt, 0]
    pos_z = {'gene': out[:n_gene], 'cell': out[n_gene:nt]}
    return loss, pos_z


# ---------------------------------------------------------------------------
if __name__ == "__main__":
    key = jax.random.PRNGKey(0)
    k_param, k_xg, k_xc, k_e, k_a, k_corrupt = jax.random.split(key, 6)

    n_gene, n_cell = 16, 8
    e_gg, e_cc, e_cg, e_gc = 32, 24, 40, 40

    params = init_params(k_param)
    prepared = prepare_params(params)

    x_gene = jax.random.normal(k_xg, (n_gene, FEAT), F32)
    x_cell = jax.random.normal(k_xc, (n_cell, FEAT), F32)
    x_tag = build_x_tag(x_gene, x_cell)

    ke = jax.random.split(k_e, 8)
    ei_gg = jnp.stack([jax.random.randint(ke[0], (e_gg,), 0, n_gene),
                       jax.random.randint(ke[1], (e_gg,), 0, n_gene)])
    ei_cc = jnp.stack([jax.random.randint(ke[2], (e_cc,), 0, n_cell),
                       jax.random.randint(ke[3], (e_cc,), 0, n_cell)])
    ei_cg = jnp.stack([jax.random.randint(ke[4], (e_cg,), 0, n_cell),   # cell -> gene
                       jax.random.randint(ke[5], (e_cg,), 0, n_gene)])
    ei_gc = jnp.stack([jax.random.randint(ke[6], (e_gc,), 0, n_gene),   # gene -> cell
                       jax.random.randint(ke[7], (e_gc,), 0, n_cell)])

    ka1, ka2 = jax.random.split(k_a)
    ea_cg = jax.random.normal(ka1, (e_cg, 1), F32)   # 1-dim edge attribute
    ea_gc = jax.random.normal(ka2, (e_gc, 1), F32)

    graph = build_graph(ei_gg, ei_cc, ei_cg, ei_gc, ea_cg, ea_gc, n_gene, n_cell)

    call = build_fused_call(n_gene, n_cell, HIDDEN)
    forward = jax.jit(lambda xt, g, prm, ck: dgi_hetero_forward(
        xt, g, prm, ck, call, n_gene, n_cell))

    loss, pos_z = forward(x_tag, graph, prepared, k_corrupt)
    jax.block_until_ready((loss, pos_z))
    print("KERNEL_OK")
</pallas_src>

<mosaic_0001>
module attributes {stable_mosaic.version = 11 : i64} {
  func.func @kernel(%arg0: memref<24x16xbf16, #tpu.memory_space<vmem>>, %arg1: memref<24x24xbf16, #tpu.memory_space<vmem>>, %arg2: memref<24x24xbf16, #tpu.memory_space<vmem>>, %arg3: memref<80x24xbf16, #tpu.memory_space<vmem>>, %arg4: memref<24x80xbf16, #tpu.memory_space<vmem>>, %arg5: memref<80x8xbf16, #tpu.memory_space<vmem>>, %arg6: memref<32x320xbf16, #tpu.memory_space<vmem>>, %arg7: memref<112x128xf32, #tpu.memory_space<vmem>>, %arg8: memref<32x32xf32, #tpu.memory_space<vmem>>) attributes {dimension_semantics = [], scalar_prefetch = 0 : i64, scratch_operands = 0 : i64, tpu.core_type = #tpu.core_type<tc>} {
    %c0 = arith.constant 0 : index
    %c0_0 = arith.constant 0 : index
    %0 = vector.load %arg0[%c0, %c0_0] : memref<24x16xbf16, #tpu.memory_space<vmem>>, vector<24x16xbf16>
    %c0_1 = arith.constant 0 : index
    %c0_2 = arith.constant 0 : index
    %1 = vector.load %arg1[%c0_1, %c0_2] : memref<24x24xbf16, #tpu.memory_space<vmem>>, vector<24x24xbf16>
    %cst = arith.constant dense<0.000000e+00> : vector<24x16xf32>
    %2 = tpu.matmul %1, %0, %cst {dimension_numbers = #tpu.dot_dimension_numbers<[1], [0], [0], [1], [0, 0, 1, 1], [], []>} : vector<24x24xbf16>, vector<24x16xbf16>, vector<24x16xf32> -> vector<24x16xf32>
    %c0_3 = arith.constant 0 : index
    %c0_4 = arith.constant 0 : index
    %3 = vector.load %arg6[%c0_3, %c0_4] : memref<32x320xbf16, #tpu.memory_space<vmem>>, vector<16x320xbf16>
    %cst_5 = arith.constant dense<0.000000e+00> : vector<24x320xf32>
    %4 = tpu.matmul %0, %3, %cst_5 {dimension_numbers = #tpu.dot_dimension_numbers<[1], [0], [0], [1], [0, 0, 1, 1], [], []>} : vector<24x16xbf16>, vector<16x320xbf16>, vector<24x320xf32> -> vector<24x320xf32>
    %c16 = arith.constant 16 : index
    %c0_6 = arith.constant 0 : index
    %5 = vector.load %arg6[%c16, %c0_6] : memref<32x320xbf16, #tpu.memory_space<vmem>>, vector<16x320xbf16>
    %6 = arith.truncf %2 : vector<24x16xf32> to vector<24x16xbf16>
    %cst_7 = arith.constant dense<0.000000e+00> : vector<24x320xf32>
    %7 = tpu.matmul %6, %5, %cst_7 {dimension_numbers = #tpu.dot_dimension_numbers<[1], [0], [0], [1], [0, 0, 1, 1], [], []>} : vector<24x16xbf16>, vector<16x320xbf16>, vector<24x320xf32> -> vector<24x320xf32>
    %8 = arith.addf %4, %7 : vector<24x320xf32>
    %c0_8 = arith.constant 0 : index
    %c0_9 = arith.constant 0 : index
    %9 = vector.load %arg5[%c0_8, %c0_9] : memref<80x8xbf16, #tpu.memory_space<vmem>>, vector<80x8xbf16>
    %c96 = arith.constant 96 : index
    %c0_10 = arith.constant 0 : index
    %10 = vector.load %arg7[%c96, %c0_10] : memref<112x128xf32, #tpu.memory_space<vmem>>, vector<8x32xf32>
    %11 = arith.truncf %10 : vector<8x32xf32> to vector<8x32xbf16>
    %cst_11 = arith.constant dense<0.000000e+00> : vector<80x32xf32>
    %12 = tpu.matmul %9, %11, %cst_11 {dimension_numbers = #tpu.dot_dimension_numbers<[1], [0], [0], [1], [0, 0, 1, 1], [], []>} : vector<80x8xbf16>, vector<8x32xbf16>, vector<80x32xf32> -> vector<80x32xf32>
    %c104 = arith.constant 104 : index
    %c0_12 = arith.constant 0 : index
    %13 = vector.load %arg7[%c104, %c0_12] : memref<112x128xf32, #tpu.memory_space<vmem>>, vector<1x32xf32>
    %14 = vector.broadcast %13 : vector<1x32xf32> to vector<80x32xf32>
    %15 = arith.addf %12, %14 : vector<80x32xf32>
    %cst_13 = arith.constant 0.000000e+00 : f32
    %16 = vector.broadcast %cst_13 : f32 to vector<80x32xf32>
    %17 = arith.maximumf %15, %16 : vector<80x32xf32>
    %c0_14 = arith.constant 0 : index
    %c0_15 = arith.constant 0 : index
    %18 = vector.load %arg7[%c0_14, %c0_15] : memref<112x128xf32, #tpu.memory_space<vmem>>, vector<32x96xf32>
    %19 = arith.truncf %17 : vector<80x32xf32> to vector<80x32xbf16>
    %20 = arith.truncf %18 : vector<32x96xf32> to vector<32x96xbf16>
    %cst_16 = arith.constant dense<0.000000e+00> : vector<80x96xf32>
    %21 = tpu.matmul %19, %20, %cst_16 {dimension_numbers = #tpu.dot_dimension_numbers<[1], [0], [0], [1], [0, 0, 1, 1], [], []>} : vector<80x32xbf16>, vector<32x96xbf16>, vector<80x96xf32> -> vector<80x96xf32>
    %c105 = arith.constant 105 : index
    %c0_17 = arith.constant 0 : index
    %22 = vector.load %arg7[%c105, %c0_17] : memref<112x128xf32, #tpu.memory_space<vmem>>, vector<1x96xf32>
    %23 = vector.broadcast %22 : vector<1x96xf32> to vector<80x96xf32>
    %24 = arith.addf %21, %23 : vector<80x96xf32>
    %c0_18 = arith.constant 0 : index
    %c0_19 = arith.constant 0 : index
    %25 = vector.load %arg2[%c0_18, %c0_19] : memref<24x24xbf16, #tpu.memory_space<vmem>>, vector<24x24xbf16>
    %26 = vector.extract_strided_slice %8 {offsets = [0, 0], sizes = [24, 64], strides = [1, 1]} : vector<24x320xf32> to vector<24x64xf32>
    %27 = arith.truncf %26 : vector<24x64xf32> to vector<24x64xbf16>
    %cst_20 = arith.constant dense<0.000000e+00> : vector<24x64xf32>
    %28 = tpu.matmul %25, %27, %cst_20 {dimension_numbers = #tpu.dot_dimension_numbers<[1], [0], [0], [1], [0, 0, 1, 1], [], []>} : vector<24x24xbf16>, vector<24x64xbf16>, vector<24x64xf32> -> vector<24x64xf32>
    %c0_21 = arith.constant 0 : index
    %c0_22 = arith.constant 0 : index
    %29 = vector.load %arg3[%c0_21, %c0_22] : memref<80x24xbf16, #tpu.memory_space<vmem>>, vector<80x24xbf16>
    %30 = vector.extract_strided_slice %8 {offsets = [0, 128], sizes = [24, 192], strides = [1, 1]} : vector<24x320xf32> to vector<24x192xf32>
    %31 = arith.truncf %30 : vector<24x192xf32> to vector<24x192xbf16>
    %cst_23 = arith.constant dense<0.000000e+00> : vector<80x192xf32>
    %32 = tpu.matmul %29, %31, %cst_23 {dimension_numbers = #tpu.dot_dimension_numbers<[1], [0], [0], [1], [0, 0, 1, 1], [], []>} : vector<80x24xbf16>, vector<24x192xbf16>, vector<80x192xf32> -> vector<80x192xf32>
    %33 = vector.extract_strided_slice %32 {offsets = [0, 0], sizes = [80, 96], strides = [1, 1]} : vector<80x192xf32> to vector<80x96xf32>
    %34 = arith.mulf %33, %24 : vector<80x96xf32>
    %35 = vector.extract_strided_slice %32 {offsets = [0, 96], sizes = [80, 96], strides = [1, 1]} : vector<80x192xf32> to vector<80x96xf32>
    %36 = arith.mulf %35, %24 : vector<80x96xf32>
    %37 = vector.extract_strided_slice %34 {offsets = [0, 0], sizes = [80, 32], strides = [1, 1]} : vector<80x96xf32> to vector<80x32xf32>
    %38 = vector.extract_strided_slice %34 {offsets = [0, 32], sizes = [80, 32], strides = [1, 1]} : vector<80x96xf32> to vector<80x32xf32>
    %39 = arith.addf %37, %38 : vector<80x32xf32>
    %40 = vector.extract_strided_slice %34 {offsets = [0, 64], sizes = [80, 32], strides = [1, 1]} : vector<80x96xf32> to vector<80x32xf32>
    %41 = arith.addf %39, %40 : vector<80x32xf32>
    %42 = vector.extract_strided_slice %36 {offsets = [0, 0], sizes = [80, 32], strides = [1, 1]} : vector<80x96xf32> to vector<80x32xf32>
    %43 = vector.extract_strided_slice %36 {offsets = [0, 32], sizes = [80, 32], strides = [1, 1]} : vector<80x96xf32> to vector<80x32xf32>
    %44 = arith.addf %42, %43 : vector<80x32xf32>
    %45 = vector.extract_strided_slice %36 {offsets = [0, 64], sizes = [80, 32], strides = [1, 1]} : vector<80x96xf32> to vector<80x32xf32>
    %46 = arith.addf %44, %45 : vector<80x32xf32>
    %47 = tpu.concatenate %41, %46 in 1 : vector<80x32xf32>, vector<80x32xf32> -> vector<80x64xf32>
    %c0_24 = arith.constant 0 : index
    %c0_25 = arith.constant 0 : index
    %48 = vector.load %arg4[%c0_24, %c0_25] : memref<24x80xbf16, #tpu.memory_space<vmem>>, vector<24x80xbf16>
    %49 = arith.truncf %47 : vector<80x64xf32> to vector<80x64xbf16>
    %cst_26 = arith.constant dense<0.000000e+00> : vector<24x64xf32>
    %50 = tpu.matmul %48, %49, %cst_26 {dimension_numbers = #tpu.dot_dimension_numbers<[1], [0], [0], [1], [0, 0, 1, 1], [], []>} : vector<24x80xbf16>, vector<80x64xbf16>, vector<24x64xf32> -> vector<24x64xf32>
    %51 = vector.extract_strided_slice %8 {offsets = [0, 64], sizes = [24, 64], strides = [1, 1]} : vector<24x320xf32> to vector<24x64xf32>
    %52 = arith.addf %28, %51 : vector<24x64xf32>
    %53 = arith.addf %52, %50 : vector<24x64xf32>
    %54 = vector.extract_strided_slice %53 {offsets = [0, 0], sizes = [16, 64], strides = [1, 1]} : vector<24x64xf32> to vector<16x64xf32>
    %c106 = arith.constant 106 : index
    %c0_27 = arith.constant 0 : index
    %55 = vector.load %arg7[%c106, %c0_27] : memref<112x128xf32, #tpu.memory_space<vmem>>, vector<1x64xf32>
    %56 = vector.broadcast %55 : vector<1x64xf32> to vector<16x64xf32>
    %57 = arith.addf %54, %56 : vector<16x64xf32>
    %cst_28 = arith.constant 5.000000e-01 : f32
    %58 = vector.broadcast %cst_28 : f32 to vector<16x64xf32>
    %59 = arith.mulf %58, %57 : vector<16x64xf32>
    %60 = vector.extract_strided_slice %53 {offsets = [16, 0], sizes = [8, 64], strides = [1, 1]} : vector<24x64xf32> to vector<8x64xf32>
    %c107 = arith.constant 107 : index
    %c0_29 = arith.constant 0 : index
    %61 = vector.load %arg7[%c107, %c0_29] : memref<112x128xf32, #tpu.memory_space<vmem>>, vector<1x64xf32>
    %62 = vector.broadcast %61 : vector<1x64xf32> to vector<8x64xf32>
    %63 = arith.addf %60, %62 : vector<8x64xf32>
    %cst_30 = arith.constant 5.000000e-01 : f32
    %64 = vector.broadcast %cst_30 : f32 to vector<8x64xf32>
    %65 = arith.mulf %64, %63 : vector<8x64xf32>
    %c32 = arith.constant 32 : index
    %c0_31 = arith.constant 0 : index
    %66 = vector.load %arg7[%c32, %c0_31] : memref<112x128xf32, #tpu.memory_space<vmem>>, vector<32x32xf32>
    %c108 = arith.constant 108 : index
    %c0_32 = arith.constant 0 : index
    %67 = vector.load %arg7[%c108, %c0_32] : memref<112x128xf32, #tpu.memory_space<vmem>>, vector<1x32xf32>
    %68 = vector.extract_strided_slice %59 {offsets = [0, 0], sizes = [16, 32], strides = [1, 1]} : vector<16x64xf32> to vector<16x32xf32>
    %69 = vector.extract_strided_slice %59 {offsets = [0, 32], sizes = [16, 32], strides = [1, 1]} : vector<16x64xf32> to vector<16x32xf32>
    %cst_33 = arith.constant dense<0.000000e+00> : vector<32xf32>
    %70 = vector.multi_reduction <add>, %68, %cst_33 [0] : vector<16x32xf32> to vector<32xf32>
    %71 = vector.shape_cast %70 : vector<32xf32> to vector<1x32xf32>
    %cst_34 = arith.constant 6.250000e-02 : f32
    %72 = vector.broadcast %cst_34 : f32 to vector<1x32xf32>
    %73 = arith.mulf %71, %72 : vector<1x32xf32>
    %cst_35 = arith.constant dense<0.000000e+00> : vector<1x32xf32>
    %74 = tpu.matmul %73, %66, %cst_35 {dimension_numbers = #tpu.dot_dimension_numbers<[1], [0], [0], [1], [0, 0, 1, 1], [], []>} : vector<1x32xf32>, vector<32x32xf32>, vector<1x32xf32> -> vector<1x32xf32>
    %75 = arith.addf %74, %67 : vector<1x32xf32>
    %76 = vector.broadcast %75 : vector<1x32xf32> to vector<16x32xf32>
    %77 = arith.mulf %68, %76 : vector<16x32xf32>
    %cst_36 = arith.constant dense<0.000000e+00> : vector<16xf32>
    %78 = vector.multi_reduction <add>, %77, %cst_36 [1] : vector<16x32xf32> to vector<16xf32>
    %79 = vector.shape_cast %78 : vector<16xf32> to vector<16x1xf32>
    %80 = vector.broadcast %75 : vector<1x32xf32> to vector<16x32xf32>
    %81 = arith.mulf %69, %80 : vector<16x32xf32>
    %cst_37 = arith.constant dense<0.000000e+00> : vector<16xf32>
    %82 = vector.multi_reduction <add>, %81, %cst_37 [1] : vector<16x32xf32> to vector<16xf32>
    %83 = vector.shape_cast %82 : vector<16xf32> to vector<16x1xf32>
    %cst_38 = arith.constant 0.000000e+00 : f32
    %84 = vector.broadcast %cst_38 : f32 to vector<16x1xf32>
    %85 = arith.minimumf %79, %84 : vector<16x1xf32>
    %86 = math.absf %79 : vector<16x1xf32>
    %cst_39 = arith.constant 0.000000e+00 : f32
    %87 = vector.broadcast %cst_39 : f32 to vector<16x1xf32>
    %88 = arith.subf %87, %86 : vector<16x1xf32>
    %89 = math.exp %88 : vector<16x1xf32>
    %90 = math.log1p %89 : vector<16x1xf32>
    %91 = arith.subf %85, %90 : vector<16x1xf32>
    %cst_40 = arith.constant dense<0.000000e+00> : vector<1xf32>
    %92 = vector.multi_reduction <add>, %91, %cst_40 [0] : vector<16x1xf32> to vector<1xf32>
    %93 = vector.shape_cast %92 : vector<1xf32> to vector<1x1xf32>
    %cst_41 = arith.constant 1.600000e+01 : f32
    %94 = vector.broadcast %cst_41 : f32 to vector<1x1xf32>
    %95 = arith.divf %93, %94 : vector<1x1xf32>
    %cst_42 = arith.constant 0.000000e+00 : f32
    %96 = vector.broadcast %cst_42 : f32 to vector<1x1xf32>
    %97 = arith.subf %96, %95 : vector<1x1xf32>
    %cst_43 = arith.constant 0.000000e+00 : f32
    %98 = vector.broadcast %cst_43 : f32 to vector<16x1xf32>
    %99 = arith.subf %98, %83 : vector<16x1xf32>
    %cst_44 = arith.constant 0.000000e+00 : f32
    %100 = vector.broadcast %cst_44 : f32 to vector<16x1xf32>
    %101 = arith.minimumf %99, %100 : vector<16x1xf32>
    %102 = math.absf %99 : vector<16x1xf32>
    %cst_45 = arith.constant 0.000000e+00 : f32
    %103 = vector.broadcast %cst_45 : f32 to vector<16x1xf32>
    %104 = arith.subf %103, %102 : vector<16x1xf32>
    %105 = math.exp %104 : vector<16x1xf32>
    %106 = math.log1p %105 : vector<16x1xf32>
    %107 = arith.subf %101, %106 : vector<16x1xf32>
    %cst_46 = arith.constant dense<0.000000e+00> : vector<1xf32>
    %108 = vector.multi_reduction <add>, %107, %cst_46 [0] : vector<16x1xf32> to vector<1xf32>
    %109 = vector.shape_cast %108 : vector<1xf32> to vector<1x1xf32>
    %cst_47 = arith.constant 1.600000e+01 : f32
    %110 = vector.broadcast %cst_47 : f32 to vector<1x1xf32>
    %111 = arith.divf %109, %110 : vector<1x1xf32>
    %112 = arith.subf %97, %111 : vector<1x1xf32>
    %c64 = arith.constant 64 : index
    %c0_48 = arith.constant 0 : index
    %113 = vector.load %arg7[%c64, %c0_48] : memref<112x128xf32, #tpu.memory_space<vmem>>, vector<32x32xf32>
    %c109 = arith.constant 109 : index
    %c0_49 = arith.constant 0 : index
    %114 = vector.load %arg7[%c109, %c0_49] : memref<112x128xf32, #tpu.memory_space<vmem>>, vector<1x32xf32>
    %115 = vector.extract_strided_slice %65 {offsets = [0, 0], sizes = [8, 32], strides = [1, 1]} : vector<8x64xf32> to vector<8x32xf32>
    %116 = vector.extract_strided_slice %65 {offsets = [0, 32], sizes = [8, 32], strides = [1, 1]} : vector<8x64xf32> to vector<8x32xf32>
    %cst_50 = arith.constant dense<0.000000e+00> : vector<32xf32>
    %117 = vector.multi_reduction <add>, %115, %cst_50 [0] : vector<8x32xf32> to vector<32xf32>
    %118 = vector.shape_cast %117 : vector<32xf32> to vector<1x32xf32>
    %cst_51 = arith.constant 1.250000e-01 : f32
    %119 = vector.broadcast %cst_51 : f32 to vector<1x32xf32>
    %120 = arith.mulf %118, %119 : vector<1x32xf32>
    %cst_52 = arith.constant dense<0.000000e+00> : vector<1x32xf32>
    %121 = tpu.matmul %120, %113, %cst_52 {dimension_numbers = #tpu.dot_dimension_numbers<[1], [0], [0], [1], [0, 0, 1, 1], [], []>} : vector<1x32xf32>, vector<32x32xf32>, vector<1x32xf32> -> vector<1x32xf32>
    %122 = arith.addf %121, %114 : vector<1x32xf32>
    %123 = vector.broadcast %122 : vector<1x32xf32> to vector<8x32xf32>
    %124 = arith.mulf %115, %123 : vector<8x32xf32>
    %cst_53 = arith.constant dense<0.000000e+00> : vector<8xf32>
    %125 = vector.multi_reduction <add>, %124, %cst_53 [1] : vector<8x32xf32> to vector<8xf32>
    %126 = vector.shape_cast %125 : vector<8xf32> to vector<8x1xf32>
    %127 = vector.broadcast %122 : vector<1x32xf32> to vector<8x32xf32>
    %128 = arith.mulf %116, %127 : vector<8x32xf32>
    %cst_54 = arith.constant dense<0.000000e+00> : vector<8xf32>
    %129 = vector.multi_reduction <add>, %128, %cst_54 [1] : vector<8x32xf32> to vector<8xf32>
    %130 = vector.shape_cast %129 : vector<8xf32> to vector<8x1xf32>
    %cst_55 = arith.constant 0.000000e+00 : f32
    %131 = vector.broadcast %cst_55 : f32 to vector<8x1xf32>
    %132 = arith.minimumf %126, %131 : vector<8x1xf32>
    %133 = math.absf %126 : vector<8x1xf32>
    %cst_56 = arith.constant 0.000000e+00 : f32
    %134 = vector.broadcast %cst_56 : f32 to vector<8x1xf32>
    %135 = arith.subf %134, %133 : vector<8x1xf32>
    %136 = math.exp %135 : vector<8x1xf32>
    %137 = math.log1p %136 : vector<8x1xf32>
    %138 = arith.subf %132, %137 : vector<8x1xf32>
    %cst_57 = arith.constant dense<0.000000e+00> : vector<1xf32>
    %139 = vector.multi_reduction <add>, %138, %cst_57 [0] : vector<8x1xf32> to vector<1xf32>
    %140 = vector.shape_cast %139 : vector<1xf32> to vector<1x1xf32>
    %cst_58 = arith.constant 8.000000e+00 : f32
    %141 = vector.broadcast %cst_58 : f32 to vector<1x1xf32>
    %142 = arith.divf %140, %141 : vector<1x1xf32>
    %cst_59 = arith.constant 0.000000e+00 : f32
    %143 = vector.broadcast %cst_59 : f32 to vector<1x1xf32>
    %144 = arith.subf %143, %142 : vector<1x1xf32>
    %cst_60 = arith.constant 0.000000e+00 : f32
    %145 = vector.broadcast %cst_60 : f32 to vector<8x1xf32>
    %146 = arith.subf %145, %130 : vector<8x1xf32>
    %cst_61 = arith.constant 0.000000e+00 : f32
    %147 = vector.broadcast %cst_61 : f32 to vector<8x1xf32>
    %148 = arith.minimumf %146, %147 : vector<8x1xf32>
    %149 = math.absf %146 : vector<8x1xf32>
    %cst_62 = arith.constant 0.000000e+00 : f32
    %150 = vector.broadcast %cst_62 : f32 to vector<8x1xf32>
    %151 = arith.subf %150, %149 : vector<8x1xf32>
    %152 = math.exp %151 : vector<8x1xf32>
    %153 = math.log1p %152 : vector<8x1xf32>
    %154 = arith.subf %148, %153 : vector<8x1xf32>
    %cst_63 = arith.constant dense<0.000000e+00> : vector<1xf32>
    %155 = vector.multi_reduction <add>, %154, %cst_63 [0] : vector<8x1xf32> to vector<1xf32>
    %156 = vector.shape_cast %155 : vector<1xf32> to vector<1x1xf32>
    %cst_64 = arith.constant 8.000000e+00 : f32
    %157 = vector.broadcast %cst_64 : f32 to vector<1x1xf32>
    %158 = arith.divf %156, %157 : vector<1x1xf32>
    %159 = arith.subf %144, %158 : vector<1x1xf32>
    %160 = arith.addf %112, %159 : vector<1x1xf32>
    %161 = vector.extract_strided_slice %59 {offsets = [0, 0], sizes = [16, 32], strides = [1, 1]} : vector<16x64xf32> to vector<16x32xf32>
    %c0_65 = arith.constant 0 : index
    %c0_66 = arith.constant 0 : index
    %162 = vector.load %arg8[%c0_65, %c0_66] : memref<32x32xf32, #tpu.memory_space<vmem>>, vector<16x32xf32>
    tpu.vector_store %arg8[%c0_65, %c0_66], %161 {strides = array<i32>} : memref<32x32xf32, #tpu.memory_space<vmem>>, vector<16x32xf32>,
    %163 = vector.extract_strided_slice %65 {offsets = [0, 0], sizes = [8, 32], strides = [1, 1]} : vector<8x64xf32> to vector<8x32xf32>
    %c16_67 = arith.constant 16 : index
    %c0_68 = arith.constant 0 : index
    %164 = vector.load %arg8[%c16_67, %c0_68] : memref<32x32xf32, #tpu.memory_space<vmem>>, vector<8x32xf32>
    tpu.vector_store %arg8[%c16_67, %c0_68], %163 {strides = array<i32>} : memref<32x32xf32, #tpu.memory_space<vmem>>, vector<8x32xf32>,
    %cst_69 = arith.constant 0.000000e+00 : f32
    %165 = vector.broadcast %cst_69 : f32 to vector<8x32xf32>
    %166 = vector.broadcast %160 : vector<1x1xf32> to vector<8x32xf32>
    %167 = arith.addf %166, %165 : vector<8x32xf32>
    %c24 = arith.constant 24 : index
    %c0_70 = arith.constant 0 : index
    %168 = vector.load %arg8[%c24, %c0_70] : memref<32x32xf32, #tpu.memory_space<vmem>>, vector<8x32xf32>
    tpu.vector_store %arg8[%c24, %c0_70], %167 {strides = array<i32>} : memref<32x32xf32, #tpu.memory_space<vmem>>, vector<8x32xf32>,
    return
  }
}

</mosaic_0001>

<llo_original>
// kernel: _lambda_.1
$region0: #{_lambda_.1}
  #allocation0 [shape = 'u32[]', space=smem, size = 0x4, offset = 0x4, fixed_abs, tag = 'smem constant byte address 0x4 - core index']
  #allocation1 [shape = 'u32[144,128]{1,0:T(1,128)}', space=vmem, size = 0x12000, scoped, tag = 'internal scratch']
  %s0 = inlined_call_operand.vmem [shape: bf16[24,16], index: 0, kind: input, shape index: {}]
  %s1 = inlined_call_operand.vmem [shape: bf16[24,24], index: 1, kind: input, shape index: {}]
  %s2 = inlined_call_operand.vmem [shape: bf16[24,24], index: 2, kind: input, shape index: {}]
  %s3 = inlined_call_operand.vmem [shape: bf16[80,24], index: 3, kind: input, shape index: {}]
  %s4 = inlined_call_operand.vmem [shape: bf16[24,80], index: 4, kind: input, shape index: {}]
  %s5 = inlined_call_operand.vmem [shape: bf16[80,8], index: 5, kind: input, shape index: {}]
  %s6 = inlined_call_operand.vmem [shape: bf16[32,320], index: 6, kind: input, shape index: {}]
  %s7 = inlined_call_operand.vmem [shape: f32[112,128], index: 7, kind: input, shape index: {}]
  %s8 = inlined_call_operand.vmem [shape: f32[32,32], index: 8, kind: output, shape index: {}]
  %s9 = sld [smem:[#allocation0]]
  $region42: #{_lambda_.1} parent=0
    _
  %s11 = ssub.s32 1, %s9
  %s12 = scalar_select 0, %s11, %s9
  // Predicated region
  $region2: #{_lambda_.1} parent=0 // pred_check
    _
  $region3: #{_lambda_.1} parent=0 // pred_check_branch
    %14 = sbr.rel (0) target = $region5
  $region4: #{_lambda_.1} parent=0 // pred_region
    _
  $region5: #{_lambda_.1} parent=0 // pred_fallthru
    _
  // Predicated region
  $region6: #{_lambda_.1} parent=0 // pred_check
    _
  $region7: #{_lambda_.1} parent=0 // pred_check_branch
    %16 = sbr.rel (0) target = $region9
  $region8: #{_lambda_.1} parent=0 // pred_region
    _
  $region9: #{_lambda_.1} parent=0 // pred_fallthru
    _
  // Predicated region
  $region10: #{_lambda_.1} parent=0 // pred_check
    _
  $region11: #{_lambda_.1} parent=0 // pred_check_branch
    %18 = sbr.rel (0) target = $region13
  $region12: #{_lambda_.1} parent=0 // pred_region
    _
  $region13: #{_lambda_.1} parent=0 // pred_fallthru
    _
  // Predicated region
  $region14: #{_lambda_.1} parent=0 // pred_check
    _
  $region15: #{_lambda_.1} parent=0 // pred_check_branch
    %20 = sbr.rel (0) target = $region17
  $region16: #{_lambda_.1} parent=0 // pred_region
    _
  $region17: #{_lambda_.1} parent=0 // pred_fallthru
    _
  // Predicated region
  $region18: #{_lambda_.1} parent=0 // pred_check
    _
  $region19: #{_lambda_.1} parent=0 // pred_check_branch
    %22 = sbr.rel (0) target = $region21
  $region20: #{_lambda_.1} parent=0 // pred_region
    _
  $region21: #{_lambda_.1} parent=0 // pred_fallthru
    _
  // Predicated region
  $region22: #{_lambda_.1} parent=0 // pred_check
    _
  $region23: #{_lambda_.1} parent=0 // pred_check_branch
    %24 = sbr.rel (0) target = $region25
  $region24: #{_lambda_.1} parent=0 // pred_region
    _
  $region25: #{_lambda_.1} parent=0 // pred_fallthru
    _
  // Predicated region
  $region26: #{_lambda_.1} parent=0 // pred_check
    _
  $region27: #{_lambda_.1} parent=0 // pred_check_branch
    %26 = sbr.rel (0) target = $region29
  $region28: #{_lambda_.1} parent=0 // pred_region
    _
  $region29: #{_lambda_.1} parent=0 // pred_fallthru
    _
  // Predicated region
  $region30: #{_lambda_.1} parent=0 // pred_check
    _
  $region31: #{_lambda_.1} parent=0 // pred_check_branch
    %28 = sbr.rel (0) target = $region33
  $region32: #{_lambda_.1} parent=0 // pred_region
    _
  $region33: #{_lambda_.1} parent=0 // pred_fallthru
    _
  %v30 = vld [vmem:[%s0] sm:$0xf]
  %v31 = vld [vmem:[%s0 + $0x4] sm:$0xf]
  %v32 = vld [vmem:[%s0 + $0x8] sm:$0xf]
  %v33 = vld [vmem:[%s1] sm:$0xf]
  %v34 = vld [vmem:[%s1 + $0x4] sm:$0xf]
  %v35 = vld [vmem:[%s1 + $0x8] sm:$0xf]
  %v39 = vunpack.c.l.b16 %v33
  %v40 = vunpack.c.l.b16 %v34
  %v41 = vunpack.c.l.b16 %v35
  %v42 = vpack.c.b16 %v40, %v39
  %v43 = vpack.c.b16 %v41, %v41
  %v47 = vunpack.c.l.b16 %v30
  %v48 = vunpack.c.l.b16 %v31
  %v49 = vunpack.c.l.b16 %v32
  %v50 = vpack.c.b16 %v48, %v47
  %v51 = vpack.c.b16 %v49, %v49
  %vm53 = vcmask 195584
  %v55 = vsel %vm53, %v42, 0
  %v58 = vsel %vm53, %v43, 0
  %vm60 = vcmask 1043456
  %v62 = vsel %vm60, %v51, 0
  %64 = vmatprep.subr.bf16.mxu0 0
  %65 = vmatpush1.bf16.msra.mxu0 %v50
  %66 = vmatprep.subr.bf16.mxu0 0
  %67 = vmatpush1.bf16.msra.mxu0 %v62
  %68 = vmatprep.subr.bf16.mxu0 0
  %69 = vmatpush1.bf16.msra.mxu0 0
  %70 = vmatprep.subr.bf16.mxu0 0
  %71 = vmatpush1.bf16.msra.mxu0 0
  %72 = vmatprep.subr.bf16.mxu0 0
  %73 = vmatpush1.bf16.msra.mxu0 0
  %74 = vmatprep.subr.bf16.mxu0 0
  %75 = vmatpush1.bf16.msra.mxu0 0
  %76 = vmatprep.subr.bf16.mxu0 0
  %77 = vmatpush1.bf16.msra.mxu0 0
  %78 = vmatprep.subr.bf16.mxu0 0
  %79 = vmatpush1.bf16.msra.mxu0 0
  %80 = vmatprep.subr.bf16.mxu0 0
  %81 = vmatpush1.bf16.msra.mxu0 0
  %82 = vmatprep.subr.bf16.mxu0 0
  %83 = vmatpush1.bf16.msra.mxu0 0
  %84 = vmatprep.subr.bf16.mxu0 0
  %85 = vmatpush1.bf16.msra.mxu0 0
  %86 = vmatprep.subr.bf16.mxu0 0
  %87 = vmatpush1.bf16.msra.mxu0 0
  %88 = vmatprep.subr.bf16.mxu0 0
  %89 = vmatpush1.bf16.msra.mxu0 0
  %90 = vmatprep.subr.bf16.mxu0 0
  %91 = vmatpush1.bf16.msra.mxu0 0
  %92 = vmatprep.subr.bf16.mxu0 0
  %93 = vmatpush1.bf16.msra.mxu0 0
  %94 = vmatprep.subr.bf16.mxu0 0
  %95 = vmatpush1.bf16.msra.mxu0 0
  %96 = vmatprep.mubr.bf16.mxu0 0
  %97 = vmatmul.mubr.bf16.gmra.mrb[0].mxu0 %v55
  %v98 = vpop.f32.mrb[0].mxu0
  %v99 = vadd.f32 0.0, %v98
  %v100 = vpop.f32.mrb[0].mxu0
  %v101 = vpop.f32.mrb[0].mxu0
  %v102 = vadd.f32 0.0, %v101
  %v103 = vpop.f32.mrb[0].mxu0
  %104 = vmatprep.mubr.bf16.mxu0 0
  %105 = vmatmul.mubr.bf16.gmra.mrb[0].mxu0 %v58
  %v106 = vpop.f32.mrb[0].mxu0
  %v107 = vadd.f32 0.0, %v106
  %v108 = vpop.f32.mrb[0].mxu0
  %v109 = vpop.f32.mrb[0].mxu0
  %v110 = vpop.f32.mrb[0].mxu0
  %111 = vdwg.mxu0
  %v112 = vld [vmem:[%s6] sm:$0xff]
  %v113 = vld [vmem:[%s6 + $0x8] sm:$0xf]
  %v114 = vld [vmem:[%s6 + $0xc] sm:$0xff]
  %v115 = vld [vmem:[%s6 + $0x14] sm:$0xf]
  %v116 = vld [vmem:[%s6 + $0x18] sm:$0xff]
  %v117 = vld [vmem:[%s6 + $0x20] sm:$0xf]
  %v118 = vld [vmem:[%s6 + $0x24] sm:$0xff]
  %v119 = vld [vmem:[%s6 + $0x2c] sm:$0xf]
  %v120 = vpack.c.bf16 %v102, %v99
  %v121 = vpack.c.bf16 %v107, %v107
  %v126 = vunpack.c.l.b16 %v116
  %v127 = vunpack.c.h.b16 %v116
  %v128 = vunpack.c.l.b16 %v117
  %v129 = vunpack.c.l.b16 %v118
  %v130 = vunpack.c.h.b16 %v118
  %v131 = vunpack.c.l.b16 %v119
  %v132 = vpack.c.b16 %v129, %v126
  %v133 = vpack.c.b16 %v130, %v127
  %v134 = vpack.c.b16 %v131, %v128
  %vm138 = vcmask 130048
  %v140 = vsel %vm138, %v120, 0
  %v143 = vsel %vm138, %v121, 0
  %145 = vmatprep.subr.bf16.mxu0 %v133
  %146 = vmatpush1.bf16.msra.mxu0 %v132
  %147 = vmatprep.subr.bf16.mxu0 0
  %148 = vmatpush1.bf16.msra.mxu0 0
  %149 = vmatprep.subr.bf16.mxu0 0
  %150 = vmatpush1.bf16.msra.mxu0 0
  %151 = vmatprep.subr.bf16.mxu0 0
  %152 = vmatpush1.bf16.msra.mxu0 0
  %153 = vmatprep.subr.bf16.mxu0 0
  %154 = vmatpush1.bf16.msra.mxu0 0
  %155 = vmatprep.subr.bf16.mxu0 0
  %156 = vmatpush1.bf16.msra.mxu0 0
  %157 = vmatprep.subr.bf16.mxu0 0
  %158 = vmatpush1.bf16.msra.mxu0 0
  %159 = vmatprep.subr.bf16.mxu0 0
  %160 = vmatpush1.bf16.msra.mxu0 0
  %161 = vmatprep.subr.bf16.mxu0 0
  %162 = vmatpush1.bf16.msra.mxu0 0
  %163 = vmatprep.subr.bf16.mxu0 0
  %164 = vmatpush1.bf16.msra.mxu0 0
  %165 = vmatprep.subr.bf16.mxu0 0
  %166 = vmatpush1.bf16.msra.mxu0 0
  %167 = vmatprep.subr.bf16.mxu0 0
  %168 = vmatpush1.bf16.msra.mxu0 0
  %169 = vmatprep.subr.bf16.mxu0 0
  %170 = vmatpush1.bf16.msra.mxu0 0
  %171 = vmatprep.subr.bf16.mxu0 0
  %172 = vmatpush1.bf16.msra.mxu0 0
  %173 = vmatprep.subr.bf16.mxu0 0
  %174 = vmatpush1.bf16.msra.mxu0 0
  %175 = vmatprep.subr.bf16.mxu0 0
  %176 = vmatpush1.bf16.msra.mxu0 0
  %177 = vmatprep.mubr.bf16.mxu0 0
  %178 = vmatmul.mubr.bf16.gmra.mrb[0].mxu0 %v140
  %v179 = vpop.f32.mrb[0].mxu0
  %v180 = vadd.f32 0.0, %v179
  %v181 = vpop.f32.mrb[0].mxu0
  %v182 = vadd.f32 0.0, %v181
  %v183 = vpop.f32.mrb[0].mxu0
  %v184 = vadd.f32 0.0, %v183
  %v185 = vpop.f32.mrb[0].mxu0
  %v186 = vadd.f32 0.0, %v185
  %187 = vmatprep.mubr.bf16.mxu0 0
  %188 = vmatmul.mubr.bf16.gmra.mrb[0].mxu0 %v143
  %v189 = vpop.f32.mrb[0].mxu0
  %v190 = vadd.f32 0.0, %v189
  %v191 = vpop.f32.mrb[0].mxu0
  %v192 = vadd.f32 0.0, %v191
  %v193 = vpop.f32.mrb[0].mxu0
  %v194 = vpop.f32.mrb[0].mxu0
  %195 = vdwg.mxu0
  %196 = vmatprep.subr.bf16.mxu0 0
  %197 = vmatpush1.bf16.msra.mxu0 %v134
  %198 = vmatprep.subr.bf16.mxu0 0
  %199 = vmatpush1.bf16.msra.mxu0 0
  %200 = vmatprep.subr.bf16.mxu0 0
  %201 = vmatpush1.bf16.msra.mxu0 0
  %202 = vmatprep.subr.bf16.mxu0 0
  %203 = vmatpush1.bf16.msra.mxu0 0
  %204 = vmatprep.subr.bf16.mxu0 0
  %205 = vmatpush1.bf16.msra.mxu0 0
  %206 = vmatprep.subr.bf16.mxu0 0
  %207 = vmatpush1.bf16.msra.mxu0 0
  %208 = vmatprep.subr.bf16.mxu0 0
  %209 = vmatpush1.bf16.msra.mxu0 0
  %210 = vmatprep.subr.bf16.mxu0 0
  %211 = vmatpush1.bf16.msra.mxu0 0
  %212 = vmatprep.subr.bf16.mxu0 0
  %213 = vmatpush1.bf16.msra.mxu0 0
  %214 = vmatprep.subr.bf16.mxu0 0
  %215 = vmatpush1.bf16.msra.mxu0 0
  %216 = vmatprep.subr.bf16.mxu0 0
  %217 = vmatpush1.bf16.msra.mxu0 0
  %218 = vmatprep.subr.bf16.mxu0 0
  %219 = vmatpush1.bf16.msra.mxu0 0
  %220 = vmatprep.subr.bf16.mxu0 0
  %221 = vmatpush1.bf16.msra.mxu0 0
  %222 = vmatprep.subr.bf16.mxu0 0
  %223 = vmatpush1.bf16.msra.mxu0 0
  %224 = vmatprep.subr.bf16.mxu0 0
  %225 = vmatpush1.bf16.msra.mxu0 0
  %226 = vmatprep.subr.bf16.mxu0 0
  %227 = vmatpush1.bf16.msra.mxu0 0
  %228 = vmatprep.mubr.bf16.mxu0 0
  %229 = vmatmul.mubr.bf16.gmra.mrb[0].mxu0 %v140
  %v230 = vpop.f32.mrb[0].mxu0
  %v231 = vadd.f32 0.0, %v230
  %v232 = vpop.f32.mrb[0].mxu0
  %v233 = vpop.f32.mrb[0].mxu0
  %v234 = vadd.f32 0.0, %v233
  %v235 = vpop.f32.mrb[0].mxu0
  %236 = vmatprep.mubr.bf16.mxu0 0
  %237 = vmatmul.mubr.bf16.gmra.mrb[0].mxu0 %v143
  %v238 = vpop.f32.mrb[0].mxu0
  %v239 = vadd.f32 0.0, %v238
  %v240 = vpop.f32.mrb[0].mxu0
  %v241 = vpop.f32.mrb[0].mxu0
  %v242 = vpop.f32.mrb[0].mxu0
  %243 = vdwg.mxu0
  %v248 = vunpack.c.l.b16 %v112
  %v249 = vunpack.c.h.b16 %v112
  %v250 = vunpack.c.l.b16 %v113
  %v251 = vunpack.c.l.b16 %v114
  %v252 = vunpack.c.h.b16 %v114
  %v253 = vunpack.c.l.b16 %v115
  %v254 = vpack.c.b16 %v251, %v248
  %v255 = vpack.c.b16 %v252, %v249
  %v256 = vpack.c.b16 %v253, %v250
  %v261 = vsel %vm138, %v50, 0
  %v263 = vsel %vm138, %v51, 0
  %265 = vmatprep.subr.bf16.mxu0 %v255
  %266 = vmatpush1.bf16.msra.mxu0 %v254
  %267 = vmatprep.subr.bf16.mxu0 0
  %268 = vmatpush1.bf16.msra.mxu0 0
  %269 = vmatprep.subr.bf16.mxu0 0
  %270 = vmatpush1.bf16.msra.mxu0 0
  %271 = vmatprep.subr.bf16.mxu0 0
  %272 = vmatpush1.bf16.msra.mxu0 0
  %273 = vmatprep.subr.bf16.mxu0 0
  %274 = vmatpush1.bf16.msra.mxu0 0
  %275 = vmatprep.subr.bf16.mxu0 0
  %276 = vmatpush1.bf16.msra.mxu0 0
  %277 = vmatprep.subr.bf16.mxu0 0
  %278 = vmatpush1.bf16.msra.mxu0 0
  %279 = vmatprep.subr.bf16.mxu0 0
  %280 = vmatpush1.bf16.msra.mxu0 0
  %281 = vmatprep.subr.bf16.mxu0 0
  %282 = vmatpush1.bf16.msra.mxu0 0
  %283 = vmatprep.subr.bf16.mxu0 0
  %284 = vmatpush1.bf16.msra.mxu0 0
  %285 = vmatprep.subr.bf16.mxu0 0
  %286 = vmatpush1.bf16.msra.mxu0 0
  %287 = vmatprep.subr.bf16.mxu0 0
  %288 = vmatpush1.bf16.msra.mxu0 0
  %289 = vmatprep.subr.bf16.mxu0 0
  %290 = vmatpush1.bf16.msra.mxu0 0
  %291 = vmatprep.subr.bf16.mxu0 0
  %292 = vmatpush1.bf16.msra.mxu0 0
  %293 = vmatprep.subr.bf16.mxu0 0
  %294 = vmatpush1.bf16.msra.mxu0 0
  %295 = vmatprep.subr.bf16.mxu0 0
  %296 = vmatpush1.bf16.msra.mxu0 0
  %297 = vmatprep.mubr.bf16.mxu0 0
  %298 = vmatmul.mubr.bf16.gmra.mrb[0].mxu0 %v261
  %v299 = vpop.f32.mrb[0].mxu0
  %v300 = vadd.f32 %v180, %v299
  %v301 = vpop.f32.mrb[0].mxu0
  %v302 = vadd.f32 %v182, %v301
  %v303 = vpop.f32.mrb[0].mxu0
  %v304 = vadd.f32 %v184, %v303
  %v305 = vpop.f32.mrb[0].mxu0
  %v306 = vadd.f32 %v186, %v305
  %307 = vmatprep.mubr.bf16.mxu0 0
  %308 = vmatmul.mubr.bf16.gmra.mrb[0].mxu0 %v263
  %v309 = vpop.f32.mrb[0].mxu0
  %v310 = vadd.f32 %v190, %v309
  %v311 = vpop.f32.mrb[0].mxu0
  %v312 = vadd.f32 %v192, %v311
  %v313 = vpop.f32.mrb[0].mxu0
  %v314 = vpop.f32.mrb[0].mxu0
  %315 = vdwg.mxu0
  %316 = vmatprep.subr.bf16.mxu0 0
  %317 = vmatpush1.bf16.msra.mxu0 %v256
  %318 = vmatprep.subr.bf16.mxu0 0
  %319 = vmatpush1.bf16.msra.mxu0 0
  %320 = vmatprep.subr.bf16.mxu0 0
  %321 = vmatpush1.bf16.msra.mxu0 0
  %322 = vmatprep.subr.bf16.mxu0 0
  %323 = vmatpush1.bf16.msra.mxu0 0
  %324 = vmatprep.subr.bf16.mxu0 0
  %325 = vmatpush1.bf16.msra.mxu0 0
  %326 = vmatprep.subr.bf16.mxu0 0
  %327 = vmatpush1.bf16.msra.mxu0 0
  %328 = vmatprep.subr.bf16.mxu0 0
  %329 = vmatpush1.bf16.msra.mxu0 0
  %330 = vmatprep.subr.bf16.mxu0 0
  %331 = vmatpush1.bf16.msra.mxu0 0
  %332 = vmatprep.subr.bf16.mxu0 0
  %333 = vmatpush1.bf16.msra.mxu0 0
  %334 = vmatprep.subr.bf16.mxu0 0
  %335 = vmatpush1.bf16.msra.mxu0 0
  %336 = vmatprep.subr.bf16.mxu0 0
  %337 = vmatpush1.bf16.msra.mxu0 0
  %338 = vmatprep.subr.bf16.mxu0 0
  %339 = vmatpush1.bf16.msra.mxu0 0
  %340 = vmatprep.subr.bf16.mxu0 0
  %341 = vmatpush1.bf16.msra.mxu0 0
  %342 = vmatprep.subr.bf16.mxu0 0
  %343 = vmatpush1.bf16.msra.mxu0 0
  %344 = vmatprep.subr.bf16.mxu0 0
  %345 = vmatpush1.bf16.msra.mxu0 0
  %346 = vmatprep.subr.bf16.mxu0 0
  %347 = vmatpush1.bf16.msra.mxu0 0
  %348 = vmatprep.mubr.bf16.mxu0 0
  %349 = vmatmul.mubr.bf16.gmra.mrb[0].mxu0 %v261
  %v350 = vpop.f32.mrb[0].mxu0
  %v351 = vadd.f32 %v231, %v350
  %v352 = vpop.f32.mrb[0].mxu0
  %v353 = vpop.f32.mrb[0].mxu0
  %v354 = vadd.f32 %v234, %v353
  %v355 = vpop.f32.mrb[0].mxu0
  %356 = vmatprep.mubr.bf16.mxu0 0
  %357 = vmatmul.mubr.bf16.gmra.mrb[0].mxu0 %v263
  %v358 = vpop.f32.mrb[0].mxu0
  %v359 = vadd.f32 %v239, %v358
  %v360 = vpop.f32.mrb[0].mxu0
  %v361 = vpop.f32.mrb[0].mxu0
  %v362 = vpop.f32.mrb[0].mxu0
  %363 = vdwg.mxu0
  %v364 = vld [vmem:[%s5] sm:$0xf]
  %v365 = vld [vmem:[%s5 + $0x4] sm:$0xf]
  %v366 = vld [vmem:[%s5 + $0x8] sm:$0xf]
  %v367 = vld [vmem:[%s5 + $0xc] sm:$0xf]
  %v368 = vld [vmem:[%s5 + $0x10] sm:$0xf]
  %v369 = vld [vmem:[%s5 + $0x14] sm:$0xf]
  %v370 = vld [vmem:[%s5 + $0x18] sm:$0xf]
  %v371 = vld [vmem:[%s5 + $0x1c] sm:$0xf]
  %v372 = vld [vmem:[%s5 + $0x20] sm:$0xf]
  %v373 = vld [vmem:[%s5 + $0x24] sm:$0xf]
  %v374 = vld [vmem:[%s7 + $0x60] sm:$0xff]
  %v375 = vpack.c.bf16 %v374, %v374
  %v376 = vld [vmem:[%s7 + $0x68] sm:$0x1]
  %v377 = vlaneseq
  %v378 = vshrl.u32 %v377, 7
  %v379 = vsub.s32 0, %v378
  %v380 = vrot.slane %v376, %v379
  %v391 = vunpack.c.l.b16 %v364
  %v392 = vunpack.c.l.b16 %v365
  %v393 = vunpack.c.l.b16 %v366
  %v394 = vunpack.c.l.b16 %v367
  %v395 = vunpack.c.l.b16 %v368
  %v396 = vunpack.c.l.b16 %v369
  %v397 = vunpack.c.l.b16 %v370
  %v398 = vunpack.c.l.b16 %v371
  %v399 = vunpack.c.l.b16 %v372
  %v400 = vunpack.c.l.b16 %v373
  %v401 = vpack.c.b16 %v392, %v391
  %v402 = vpack.c.b16 %v394, %v393
  %v403 = vpack.c.b16 %v396, %v395
  %v404 = vpack.c.b16 %v398, %v397
  %v405 = vpack.c.b16 %v400, %v399
  %vm406 = vcmask 64512
  %v408 = vsel %vm406, %v401, 0
  %v411 = vsel %vm406, %v402, 0
  %v414 = vsel %vm406, %v403, 0
  %v417 = vsel %vm406, %v404, 0
  %v420 = vsel %vm406, %v405, 0
  %v423 = vsel %vm60, %v375, 0
  %425 = vmatprep.subr.bf16.mxu0 0
  %426 = vmatpush1.bf16.msra.mxu0 %v423
  %427 = vmatprep.subr.bf16.mxu0 0
  %428 = vmatpush1.bf16.msra.mxu0 0
  %429 = vmatprep.subr.bf16.mxu0 0
  %430 = vmatpush1.bf16.msra.mxu0 0
  %431 = vmatprep.subr.bf16.mxu0 0
  %432 = vmatpush1.bf16.msra.mxu0 0
  %433 = vmatprep.subr.bf16.mxu0 0
  %434 = vmatpush1.bf16.msra.mxu0 0
  %435 = vmatprep.subr.bf16.mxu0 0
  %436 = vmatpush1.bf16.msra.mxu0 0
  %437 = vmatprep.subr.bf16.mxu0 0
  %438 = vmatpush1.bf16.msra.mxu0 0
  %439 = vmatprep.subr.bf16.mxu0 0
  %440 = vmatpush1.bf16.msra.mxu0 0
  %441 = vmatprep.subr.bf16.mxu0 0
  %442 = vmatpush1.bf16.msra.mxu0 0
  %443 = vmatprep.subr.bf16.mxu0 0
  %444 = vmatpush1.bf16.msra.mxu0 0
  %445 = vmatprep.subr.bf16.mxu0 0
  %446 = vmatpush1.bf16.msra.mxu0 0
  %447 = vmatprep.subr.bf16.mxu0 0
  %448 = vmatpush1.bf16.msra.mxu0 0
  %449 = vmatprep.subr.bf16.mxu0 0
  %450 = vmatpush1.bf16.msra.mxu0 0
  %451 = vmatprep.subr.bf16.mxu0 0
  %452 = vmatpush1.bf16.msra.mxu0 0
  %453 = vmatprep.subr.bf16.mxu0 0
  %454 = vmatpush1.bf16.msra.mxu0 0
  %455 = vmatprep.subr.bf16.mxu0 0
  %456 = vmatpush1.bf16.msra.mxu0 0
  %457 = vmatprep.mubr.bf16.mxu0 0
  %458 = vmatmul.mubr.bf16.gmra.mrb[0].mxu0 %v408
  %v459 = vpop.f32.mrb[0].mxu0
  %v460 = vadd.f32 %v380, %v459
  %v461 = vpop.f32.mrb[0].mxu0
  %v462 = vpop.f32.mrb[0].mxu0
  %v463 = vadd.f32 %v380, %v462
  %v464 = vpop.f32.mrb[0].mxu0
  %465 = vmatprep.mubr.bf16.mxu0 0
  %466 = vmatmul.mubr.bf16.gmra.mrb[0].mxu0 %v411
  %v467 = vpop.f32.mrb[0].mxu0
  %v468 = vadd.f32 %v380, %v467
  %v469 = vpop.f32.mrb[0].mxu0
  %v470 = vpop.f32.mrb[0].mxu0
  %v471 = vadd.f32 %v380, %v470
  %v472 = vpop.f32.mrb[0].mxu0
  %473 = vmatprep.mubr.bf16.mxu0 0
  %474 = vmatmul.mubr.bf16.gmra.mrb[0].mxu0 %v414
  %v475 = vpop.f32.mrb[0].mxu0
  %v476 = vadd.f32 %v380, %v475
  %v477 = vpop.f32.mrb[0].mxu0
  %v478 = vpop.f32.mrb[0].mxu0
  %v479 = vadd.f32 %v380, %v478
  %v480 = vpop.f32.mrb[0].mxu0
  %481 = vmatprep.mubr.bf16.mxu0 0
  %482 = vmatmul.mubr.bf16.gmra.mrb[0].mxu0 %v417
  %v483 = vpop.f32.mrb[0].mxu0
  %v484 = vadd.f32 %v380, %v483
  %v485 = vpop.f32.mrb[0].mxu0
  %v486 = vpop.f32.mrb[0].mxu0
  %v487 = vadd.f32 %v380, %v486
  %v488 = vpop.f32.mrb[0].mxu0
  %489 = vmatprep.mubr.bf16.mxu0 0
  %490 = vmatmul.mubr.bf16.gmra.mrb[0].mxu0 %v420
  %v491 = vpop.f32.mrb[0].mxu0
  %v492 = vadd.f32 %v380, %v491
  %v493 = vpop.f32.mrb[0].mxu0
  %v494 = vpop.f32.mrb[0].mxu0
  %v495 = vadd.f32 %v380, %v494
  %v496 = vpop.f32.mrb[0].mxu0
  %497 = vdwg.mxu0
  %v498 = vmax.f32 %v460, 0.0
  %v499 = vmax.f32 %v463, 0.0
  %v500 = vmax.f32 %v468, 0.0
  %v501 = vmax.f32 %v471, 0.0
  %v502 = vmax.f32 %v476, 0.0
  %v503 = vmax.f32 %v479, 0.0
  %v504 = vmax.f32 %v484, 0.0
  %v505 = vmax.f32 %v487, 0.0
  %v506 = vmax.f32 %v492, 0.0
  %v507 = vmax.f32 %v495, 0.0
  %v508 = vld [vmem:[%s7] sm:$0xff]
  %v509 = vld [vmem:[%s7 + $0x8] sm:$0xff]
  %v510 = vld [vmem:[%s7 + $0x10] sm:$0xff]
  %v511 = vld [vmem:[%s7 + $0x18] sm:$0xff]
  %v512 = vpack.c.bf16 %v499, %v498
  %v513 = vpack.c.bf16 %v501, %v500
  %v514 = vpack.c.bf16 %v503, %v502
  %v515 = vpack.c.bf16 %v505, %v504
  %v516 = vpack.c.bf16 %v507, %v506
  %v517 = vpack.c.bf16 %v509, %v508
  %v518 = vpack.c.bf16 %v511, %v510
  %v519 = vld [vmem:[%s7 + $0x69] sm:$0x1]
  %v520 = vlaneseq
  %v521 = vshrl.u32 %v520, 7
  %v522 = vsub.s32 0, %v521
  %v523 = vrot.slane %v519, %v522
  %vm524 = vcmask 261120
  %v526 = vsel %vm524, %v512, 0
  %v529 = vsel %vm524, %v513, 0
  %v532 = vsel %vm524, %v514, 0
  %v535 = vsel %vm524, %v515, 0
  %v538 = vsel %vm524, %v516, 0
  %540 = vmatprep.subr.bf16.mxu0 0
  %541 = vmatpush1.bf16.msra.mxu0 %v517
  %542 = vmatprep.subr.bf16.mxu0 0
  %543 = vmatpush1.bf16.msra.mxu0 %v518
  %544 = vmatprep.subr.bf16.mxu0 0
  %545 = vmatpush1.bf16.msra.mxu0 0
  %546 = vmatprep.subr.bf16.mxu0 0
  %547 = vmatpush1.bf16.msra.mxu0 0
  %548 = vmatprep.subr.bf16.mxu0 0
  %549 = vmatpush1.bf16.msra.mxu0 0
  %550 = vmatprep.subr.bf16.mxu0 0
  %551 = vmatpush1.bf16.msra.mxu0 0
  %552 = vmatprep.subr.bf16.mxu0 0
  %553 = vmatpush1.bf16.msra.mxu0 0
  %554 = vmatprep.subr.bf16.mxu0 0
  %555 = vmatpush1.bf16.msra.mxu0 0
  %556 = vmatprep.subr.bf16.mxu0 0
  %557 = vmatpush1.bf16.msra.mxu0 0
  %558 = vmatprep.subr.bf16.mxu0 0
  %559 = vmatpush1.bf16.msra.mxu0 0
  %560 = vmatprep.subr.bf16.mxu0 0
  %561 = vmatpush1.bf16.msra.mxu0 0
  %562 = vmatprep.subr.bf16.mxu0 0
  %563 = vmatpush1.bf16.msra.mxu0 0
  %564 = vmatprep.subr.bf16.mxu0 0
  %565 = vmatpush1.bf16.msra.mxu0 0
  %566 = vmatprep.subr.bf16.mxu0 0
  %567 = vmatpush1.bf16.msra.mxu0 0
  %568 = vmatprep.subr.bf16.mxu0 0
  %569 = vmatpush1.bf16.msra.mxu0 0
  %570 = vmatprep.subr.bf16.mxu0 0
  %571 = vmatpush1.bf16.msra.mxu0 0
  %572 = vmatprep.mubr.bf16.mxu0 0
  %573 = vmatmul.mubr.bf16.gmra.mrb[0].mxu0 %v526
  %v574 = vpop.f32.mrb[0].mxu0
  %v575 = vadd.f32 %v523, %v574
  %v576 = vpop.f32.mrb[0].mxu0
  %v577 = vpop.f32.mrb[0].mxu0
  %v578 = vadd.f32 %v523, %v577
  %v579 = vpop.f32.mrb[0].mxu0
  %580 = vmatprep.mubr.bf16.mxu0 0
  %581 = vmatmul.mubr.bf16.gmra.mrb[0].mxu0 %v529
  %v582 = vpop.f32.mrb[0].mxu0
  %v583 = vadd.f32 %v523, %v582
  %v584 = vpop.f32.mrb[0].mxu0
  %v585 = vpop.f32.mrb[0].mxu0
  %v586 = vadd.f32 %v523, %v585
  %v587 = vpop.f32.mrb[0].mxu0
  %588 = vmatprep.mubr.bf16.mxu0 0
  %589 = vmatmul.mubr.bf16.gmra.mrb[0].mxu0 %v532
  %v590 = vpop.f32.mrb[0].mxu0
  %v591 = vadd.f32 %v523, %v590
  %v592 = vpop.f32.mrb[0].mxu0
  %v593 = vpop.f32.mrb[0].mxu0
  %v594 = vadd.f32 %v523, %v593
  %v595 = vpop.f32.mrb[0].mxu0
  %596 = vmatprep.mubr.bf16.mxu0 0
  %597 = vmatmul.mubr.bf16.gmra.mrb[0].mxu0 %v535
  %v598 = vpop.f32.mrb[0].mxu0
  %v599 = vadd.f32 %v523, %v598
  %v600 = vpop.f32.mrb[0].mxu0
  %v601 = vpop.f32.mrb[0].mxu0
  %v602 = vadd.f32 %v523, %v601
  %v603 = vpop.f32.mrb[0].mxu0
  %604 = vmatprep.mubr.bf16.mxu0 0
  %605 = vmatmul.mubr.bf16.gmra.mrb[0].mxu0 %v538
  %v606 = vpop.f32.mrb[0].mxu0
  %v607 = vadd.f32 %v523, %v606
  %v608 = vpop.f32.mrb[0].mxu0
  %v609 = vpop.f32.mrb[0].mxu0
  %v610 = vadd.f32 %v523, %v609
  %v611 = vpop.f32.mrb[0].mxu0
  %612 = vdwg.mxu0
  %v613 = vld [vmem:[%s2] sm:$0xf]
  %v614 = vld [vmem:[%s2 + $0x4] sm:$0xf]
  %v615 = vld [vmem:[%s2 + $0x8] sm:$0xf]
  %v616 = vpack.c.bf16 %v304, %v300
  %v617 = vpack.c.bf16 %v310, %v310
  %v618 = vld [vmem:[%s3] sm:$0xf]
  %v619 = vld [vmem:[%s3 + $0x4] sm:$0xf]
  %v620 = vld [vmem:[%s3 + $0x8] sm:$0xf]
  %v621 = vld [vmem:[%s3 + $0xc] sm:$0xf]
  %v622 = vld [vmem:[%s3 + $0x10] sm:$0xf]
  %v623 = vld [vmem:[%s3 + $0x14] sm:$0xf]
  %v624 = vld [vmem:[%s3 + $0x18] sm:$0xf]
  %v625 = vld [vmem:[%s3 + $0x1c] sm:$0xf]
  %v626 = vld [vmem:[%s3 + $0x20] sm:$0xf]
  %v627 = vld [vmem:[%s3 + $0x24] sm:$0xf]
  %v628 = vpack.c.bf16 %v306, %v302
  %v629 = vpack.c.bf16 %v354, %v351
  %v630 = vpack.c.bf16 %v312, %v312
  %v631 = vpack.c.bf16 %v359, %v359
  %v642 = vunpack.c.l.b16 %v618
  %v643 = vunpack.c.l.b16 %v619
  %v644 = vunpack.c.l.b16 %v620
  %v645 = vunpack.c.l.b16 %v621
  %v646 = vunpack.c.l.b16 %v622
  %v647 = vunpack.c.l.b16 %v623
  %v648 = vunpack.c.l.b16 %v624
  %v649 = vunpack.c.l.b16 %v625
  %v650 = vunpack.c.l.b16 %v626
  %v651 = vunpack.c.l.b16 %v627
  %v652 = vpack.c.b16 %v643, %v642
  %v653 = vpack.c.b16 %v645, %v644
  %v654 = vpack.c.b16 %v647, %v646
  %v655 = vpack.c.b16 %v649, %v648
  %v656 = vpack.c.b16 %v651, %v650
  %v658 = vsel %vm53, %v652, 0
  %v661 = vsel %vm53, %v653, 0
  %v664 = vsel %vm53, %v654, 0
  %v667 = vsel %vm53, %v655, 0
  %v670 = vsel %vm53, %v656, 0
  %v673 = vsel %vm60, %v630, 0
  %v676 = vsel %vm60, %v631, 0
  %678 = vmatprep.subr.bf16.mxu0 %v629
  %679 = vmatpush1.bf16.msra.mxu0 %v628
  %680 = vmatprep.subr.bf16.mxu0 %v676
  %681 = vmatpush1.bf16.msra.mxu0 %v673
  %682 = vmatprep.subr.bf16.mxu0 0
  %683 = vmatpush1.bf16.msra.mxu0 0
  %684 = vmatprep.subr.bf16.mxu0 0
  %685 = vmatpush1.bf16.msra.mxu0 0
  %686 = vmatprep.subr.bf16.mxu0 0
  %687 = vmatpush1.bf16.msra.mxu0 0
  %688 = vmatprep.subr.bf16.mxu0 0
  %689 = vmatpush1.bf16.msra.mxu0 0
  %690 = vmatprep.subr.bf16.mxu0 0
  %691 = vmatpush1.bf16.msra.mxu0 0
  %692 = vmatprep.subr.bf16.mxu0 0
  %693 = vmatpush1.bf16.msra.mxu0 0
  %694 = vmatprep.subr.bf16.mxu0 0
  %695 = vmatpush1.bf16.msra.mxu0 0
  %696 = vmatprep.subr.bf16.mxu0 0
  %697 = vmatpush1.bf16.msra.mxu0 0
  %698 = vmatprep.subr.bf16.mxu0 0
  %699 = vmatpush1.bf16.msra.mxu0 0
  %700 = vmatprep.subr.bf16.mxu0 0
  %701 = vmatpush1.bf16.msra.mxu0 0
  %702 = vmatprep.subr.bf16.mxu0 0
  %703 = vmatpush1.bf16.msra.mxu0 0
  %704 = vmatprep.subr.bf16.mxu0 0
  %705 = vmatpush1.bf16.msra.mxu0 0
  %706 = vmatprep.subr.bf16.mxu0 0
  %707 = vmatpush1.bf16.msra.mxu0 0
  %708 = vmatprep.subr.bf16.mxu0 0
  %709 = vmatpush1.bf16.msra.mxu0 0
  %710 = vmatprep.mubr.bf16.mxu0 0
  %711 = vmatmul.mubr.bf16.gmra.mrb[0].mxu0 %v658
  %v712 = vpop.f32.mrb[0].mxu0
  %v713 = vadd.f32 0.0, %v712
  %v714 = vpop.f32.mrb[0].mxu0
  %v715 = vadd.f32 0.0, %v714
  %v716 = vpop.f32.mrb[0].mxu0
  %v717 = vadd.f32 0.0, %v716
  %v718 = vpop.f32.mrb[0].mxu0
  %v719 = vadd.f32 0.0, %v718
  %720 = vmatprep.mubr.bf16.mxu0 0
  %721 = vmatmul.mubr.bf16.gmra.mrb[0].mxu0 %v661
  %v722 = vpop.f32.mrb[0].mxu0
  %v723 = vadd.f32 0.0, %v722
  %v724 = vpop.f32.mrb[0].mxu0
  %v725 = vadd.f32 0.0, %v724
  %v726 = vpop.f32.mrb[0].mxu0
  %v727 = vadd.f32 0.0, %v726
  %v728 = vpop.f32.mrb[0].mxu0
  %v729 = vadd.f32 0.0, %v728
  %730 = vmatprep.mubr.bf16.mxu0 0
  %731 = vmatmul.mubr.bf16.gmra.mrb[0].mxu0 %v664
  %v732 = vpop.f32.mrb[0].mxu0
  %v733 = vadd.f32 0.0, %v732
  %v734 = vpop.f32.mrb[0].mxu0
  %v735 = vadd.f32 0.0, %v734
  %v736 = vpop.f32.mrb[0].mxu0
  %v737 = vadd.f32 0.0, %v736
  %v738 = vpop.f32.mrb[0].mxu0
  %v739 = vadd.f32 0.0, %v738
  %740 = vmatprep.mubr.bf16.mxu0 0
  %741 = vmatmul.mubr.bf16.gmra.mrb[0].mxu0 %v667
  %v742 = vpop.f32.mrb[0].mxu0
  %v743 = vadd.f32 0.0, %v742
  %v744 = vpop.f32.mrb[0].mxu0
  %v745 = vadd.f32 0.0, %v744
  %v746 = vpop.f32.mrb[0].mxu0
  %v747 = vadd.f32 0.0, %v746
  %v748 = vpop.f32.mrb[0].mxu0
  %v749 = vadd.f32 0.0, %v748
  %750 = vmatprep.mubr.bf16.mxu0 0
  %751 = vmatmul.mubr.bf16.gmra.mrb[0].mxu0 %v670
  %v752 = vpop.f32.mrb[0].mxu0
  %v753 = vadd.f32 0.0, %v752
  %v754 = vpop.f32.mrb[0].mxu0
  %v755 = vadd.f32 0.0, %v754
  %v756 = vpop.f32.mrb[0].mxu0
  %v757 = vadd.f32 0.0, %v756
  %v758 = vpop.f32.mrb[0].mxu0
  %v759 = vadd.f32 0.0, %v758
  %760 = vdwg.mxu0
  %v761 = vmul.f32 %v713, %v575
  %v762 = vmul.f32 %v717, %v578
  %v763 = vmul.f32 %v723, %v583
  %v764 = vmul.f32 %v727, %v586
  %v765 = vmul.f32 %v733, %v591
  %v766 = vmul.f32 %v737, %v594
  %v767 = vmul.f32 %v743, %v599
  %v768 = vmul.f32 %v747, %v602
  %v769 = vmul.f32 %v753, %v607
  %v770 = vmul.f32 %v757, %v610
  %781 = vrot.lane.b32.xlu0 %v575, 96
  %v782 = vpop.permute.xlu0 %781
  %783 = vrot.lane.b32.xlu0 %v578, 96
  %v784 = vpop.permute.xlu0 %783
  %785 = vrot.lane.b32.xlu0 %v583, 96
  %v786 = vpop.permute.xlu0 %785
  %787 = vrot.lane.b32.xlu0 %v586, 96
  %v788 = vpop.permute.xlu0 %787
  %789 = vrot.lane.b32.xlu0 %v591, 96
  %v790 = vpop.permute.xlu0 %789
  %791 = vrot.lane.b32.xlu0 %v594, 96
  %v792 = vpop.permute.xlu0 %791
  %793 = vrot.lane.b32.xlu0 %v599, 96
  %v794 = vpop.permute.xlu0 %793
  %795 = vrot.lane.b32.xlu0 %v602, 96
  %v796 = vpop.permute.xlu0 %795
  %797 = vrot.lane.b32.xlu0 %v607, 96
  %v798 = vpop.permute.xlu0 %797
  %799 = vrot.lane.b32.xlu0 %v610, 96
  %v800 = vpop.permute.xlu0 %799
  %v811 = vmul.f32 %v713, %v782
  %v812 = vmul.f32 %v715, %v782
  %v813 = vmul.f32 %v717, %v784
  %v814 = vmul.f32 %v719, %v784
  %v815 = vmul.f32 %v723, %v786
  %v816 = vmul.f32 %v725, %v786
  %v817 = vmul.f32 %v727, %v788
  %v818 = vmul.f32 %v729, %v788
  %v819 = vmul.f32 %v733, %v790
  %v820 = vmul.f32 %v735, %v790
  %v821 = vmul.f32 %v737, %v792
  %v822 = vmul.f32 %v739, %v792
  %v823 = vmul.f32 %v743, %v794
  %v824 = vmul.f32 %v745, %v794
  %v825 = vmul.f32 %v747, %v796
  %v826 = vmul.f32 %v749, %v796
  %v827 = vmul.f32 %v753, %v798
  %v828 = vmul.f32 %v755, %v798
  %v829 = vmul.f32 %v757, %v800
  %v830 = vmul.f32 %v759, %v800
  %841 = vrot.lane.b32.xlu0 %v761, 96
  %v842 = vpop.permute.xlu0 %841
  %843 = vrot.lane.b32.xlu0 %v762, 96
  %v844 = vpop.permute.xlu0 %843
  %845 = vrot.lane.b32.xlu0 %v763, 96
  %v846 = vpop.permute.xlu0 %845
  %847 = vrot.lane.b32.xlu0 %v764, 96
  %v848 = vpop.permute.xlu0 %847
  %849 = vrot.lane.b32.xlu0 %v765, 96
  %v850 = vpop.permute.xlu0 %849
  %851 = vrot.lane.b32.xlu0 %v766, 96
  %v852 = vpop.permute.xlu0 %851
  %853 = vrot.lane.b32.xlu0 %v767, 96
  %v854 = vpop.permute.xlu0 %853
  %855 = vrot.lane.b32.xlu0 %v768, 96
  %v856 = vpop.permute.xlu0 %855
  %857 = vrot.lane.b32.xlu0 %v769, 96
  %v858 = vpop.permute.xlu0 %857
  %859 = vrot.lane.b32.xlu0 %v770, 96
  %v860 = vpop.permute.xlu0 %859
  %v871 = vadd.f32 %v761, %v842
  %v872 = vadd.f32 %v762, %v844
  %v873 = vadd.f32 %v763, %v846
  %v874 = vadd.f32 %v764, %v848
  %v875 = vadd.f32 %v765, %v850
  %v876 = vadd.f32 %v766, %v852
  %v877 = vadd.f32 %v767, %v854
  %v878 = vadd.f32 %v768, %v856
  %v879 = vadd.f32 %v769, %v858
  %v880 = vadd.f32 %v770, %v860
  %881 = vrot.lane.b32.xlu0 %v761, 64
  %v882 = vpop.permute.xlu0 %881
  %883 = vrot.lane.b32.xlu0 %v762, 64
  %v884 = vpop.permute.xlu0 %883
  %885 = vrot.lane.b32.xlu0 %v763, 64
  %v886 = vpop.permute.xlu0 %885
  %887 = vrot.lane.b32.xlu0 %v764, 64
  %v888 = vpop.permute.xlu0 %887
  %889 = vrot.lane.b32.xlu0 %v765, 64
  %v890 = vpop.permute.xlu0 %889
  %891 = vrot.lane.b32.xlu0 %v766, 64
  %v892 = vpop.permute.xlu0 %891
  %893 = vrot.lane.b32.xlu0 %v767, 64
  %v894 = vpop.permute.xlu0 %893
  %895 = vrot.lane.b32.xlu0 %v768, 64
  %v896 = vpop.permute.xlu0 %895
  %897 = vrot.lane.b32.xlu0 %v769, 64
  %v898 = vpop.permute.xlu0 %897
  %899 = vrot.lane.b32.xlu0 %v770, 64
  %v900 = vpop.permute.xlu0 %899
  %v911 = vadd.f32 %v871, %v882
  %v912 = vadd.f32 %v872, %v884
  %v913 = vadd.f32 %v873, %v886
  %v914 = vadd.f32 %v874, %v888
  %v915 = vadd.f32 %v875, %v890
  %v916 = vadd.f32 %v876, %v892
  %v917 = vadd.f32 %v877, %v894
  %v918 = vadd.f32 %v878, %v896
  %v919 = vadd.f32 %v879, %v898
  %v920 = vadd.f32 %v880, %v900
  %931 = vrot.lane.b32.xlu0 %v812, 96
  %v932 = vpop.permute.xlu0 %931
  %933 = vrot.lane.b32.xlu0 %v814, 96
  %v934 = vpop.permute.xlu0 %933
  %935 = vrot.lane.b32.xlu0 %v816, 96
  %v936 = vpop.permute.xlu0 %935
  %937 = vrot.lane.b32.xlu0 %v818, 96
  %v938 = vpop.permute.xlu0 %937
  %939 = vrot.lane.b32.xlu0 %v820, 96
  %v940 = vpop.permute.xlu0 %939
  %941 = vrot.lane.b32.xlu0 %v822, 96
  %v942 = vpop.permute.xlu0 %941
  %943 = vrot.lane.b32.xlu0 %v824, 96
  %v944 = vpop.permute.xlu0 %943
  %945 = vrot.lane.b32.xlu0 %v826, 96
  %v946 = vpop.permute.xlu0 %945
  %947 = vrot.lane.b32.xlu0 %v828, 96
  %v948 = vpop.permute.xlu0 %947
  %949 = vrot.lane.b32.xlu0 %v830, 96
  %v950 = vpop.permute.xlu0 %949
  %v961 = vadd.f32 %v811, %v932
  %v962 = vadd.f32 %v813, %v934
  %v963 = vadd.f32 %v815, %v936
  %v964 = vadd.f32 %v817, %v938
  %v965 = vadd.f32 %v819, %v940
  %v966 = vadd.f32 %v821, %v942
  %v967 = vadd.f32 %v823, %v944
  %v968 = vadd.f32 %v825, %v946
  %v969 = vadd.f32 %v827, %v948
  %v970 = vadd.f32 %v829, %v950
  %971 = vrot.lane.b32.xlu0 %v812, 64
  %v972 = vpop.permute.xlu0 %971
  %973 = vrot.lane.b32.xlu0 %v814, 64
  %v974 = vpop.permute.xlu0 %973
  %975 = vrot.lane.b32.xlu0 %v816, 64
  %v976 = vpop.permute.xlu0 %975
  %977 = vrot.lane.b32.xlu0 %v818, 64
  %v978 = vpop.permute.xlu0 %977
  %979 = vrot.lane.b32.xlu0 %v820, 64
  %v980 = vpop.permute.xlu0 %979
  %981 = vrot.lane.b32.xlu0 %v822, 64
  %v982 = vpop.permute.xlu0 %981
  %983 = vrot.lane.b32.xlu0 %v824, 64
  %v984 = vpop.permute.xlu0 %983
  %985 = vrot.lane.b32.xlu0 %v826, 64
  %v986 = vpop.permute.xlu0 %985
  %987 = vrot.lane.b32.xlu0 %v828, 64
  %v988 = vpop.permute.xlu0 %987
  %989 = vrot.lane.b32.xlu0 %v830, 64
  %v990 = vpop.permute.xlu0 %989
  %v1001 = vadd.f32 %v961, %v972
  %v1002 = vadd.f32 %v962, %v974
  %v1003 = vadd.f32 %v963, %v976
  %v1004 = vadd.f32 %v964, %v978
  %v1005 = vadd.f32 %v965, %v980
  %v1006 = vadd.f32 %v966, %v982
  %v1007 = vadd.f32 %v967, %v984
  %v1008 = vadd.f32 %v968, %v986
  %v1009 = vadd.f32 %v969, %v988
  %v1010 = vadd.f32 %v970, %v990
  %1021 = vrot.lane.b32.xlu0 %v1001, 64
  %v1022 = vpop.permute.xlu0 %1021
  %1023 = vrot.lane.b32.xlu0 %v1002, 64
  %v1024 = vpop.permute.xlu0 %1023
  %1025 = vrot.lane.b32.xlu0 %v1003, 64
  %v1026 = vpop.permute.xlu0 %1025
  %1027 = vrot.lane.b32.xlu0 %v1004, 64
  %v1028 = vpop.permute.xlu0 %1027
  %1029 = vrot.lane.b32.xlu0 %v1005, 64
  %v1030 = vpop.permute.xlu0 %1029
  %1031 = vrot.lane.b32.xlu0 %v1006, 64
  %v1032 = vpop.permute.xlu0 %1031
  %1033 = vrot.lane.b32.xlu0 %v1007, 64
  %v1034 = vpop.permute.xlu0 %1033
  %1035 = vrot.lane.b32.xlu0 %v1008, 64
  %v1036 = vpop.permute.xlu0 %1035
  %1037 = vrot.lane.b32.xlu0 %v1009, 64
  %v1038 = vpop.permute.xlu0 %1037
  %1039 = vrot.lane.b32.xlu0 %v1010, 64
  %v1040 = vpop.permute.xlu0 %1039
  %v1051 = vsel %vm524, %v911, %v1022
  %v1052 = vsel %vm524, %v912, %v1024
  %v1053 = vsel %vm524, %v913, %v1026
  %v1054 = vsel %vm524, %v914, %v1028
  %v1055 = vsel %vm524, %v915, %v1030
  %v1056 = vsel %vm524, %v916, %v1032
  %v1057 = vsel %vm524, %v917, %v1034
  %v1058 = vsel %vm524, %v918, %v1036
  %v1059 = vsel %vm524, %v919, %v1038
  %v1060 = vsel %vm524, %v920, %v1040
  %v1061 = vld [vmem:[%s4] sm:$0xf]
  %v1062 = vld [vmem:[%s4 + $0x4] sm:$0xf]
  %v1063 = vld [vmem:[%s4 + $0x8] sm:$0xf]
  %v1064 = vpack.c.bf16 %v1052, %v1051
  %v1065 = vpack.c.bf16 %v1054, %v1053
  %v1066 = vpack.c.bf16 %v1056, %v1055
  %v1067 = vpack.c.bf16 %v1058, %v1057
  %v1068 = vpack.c.bf16 %v1060, %v1059
  %v1072 = vunpack.c.l.b16 %v1061
  %v1073 = vunpack.c.l.b16 %v1062
  %v1074 = vunpack.c.l.b16 %v1063
  %v1075 = vpack.c.b16 %v1073, %v1072
  %v1076 = vpack.c.b16 %v1074, %v1074
  %vm1077 = vcmask 654336
  %v1079 = vsel %vm1077, %v1075, 0
  %v1082 = vsel %vm1077, %v1076, 0
  %1084 = vmatprep.subr.bf16.mxu0 0
  %1085 = vmatpush1.bf16.msra.mxu0 %v1064
  %1086 = vmatprep.subr.bf16.mxu0 0
  %1087 = vmatpush1.bf16.msra.mxu0 %v1065
  %1088 = vmatprep.subr.bf16.mxu0 0
  %1089 = vmatpush1.bf16.msra.mxu0 %v1066
  %1090 = vmatprep.subr.bf16.mxu0 0
  %1091 = vmatpush1.bf16.msra.mxu0 %v1067
  %1092 = vmatprep.subr.bf16.mxu0 0
  %1093 = vmatpush1.bf16.msra.mxu0 %v1068
  %1094 = vmatprep.subr.bf16.mxu0 0
  %1095 = vmatpush1.bf16.msra.mxu0 0
  %1096 = vmatprep.subr.bf16.mxu0 0
  %1097 = vmatpush1.bf16.msra.mxu0 0
  %1098 = vmatprep.subr.bf16.mxu0 0
  %1099 = vmatpush1.bf16.msra.mxu0 0
  %1100 = vmatprep.subr.bf16.mxu0 0
  %1101 = vmatpush1.bf16.msra.mxu0 0
  %1102 = vmatprep.subr.bf16.mxu0 0
  %1103 = vmatpush1.bf16.msra.mxu0 0
  %1104 = vmatprep.subr.bf16.mxu0 0
  %1105 = vmatpush1.bf16.msra.mxu0 0
  %1106 = vmatprep.subr.bf16.mxu0 0
  %1107 = vmatpush1.bf16.msra.mxu0 0
  %1108 = vmatprep.subr.bf16.mxu0 0
  %1109 = vmatpush1.bf16.msra.mxu0 0
  %1110 = vmatprep.subr.bf16.mxu0 0
  %1111 = vmatpush1.bf16.msra.mxu0 0
  %1112 = vmatprep.subr.bf16.mxu0 0
  %1113 = vmatpush1.bf16.msra.mxu0 0
  %1114 = vmatprep.subr.bf16.mxu0 0
  %1115 = vmatpush1.bf16.msra.mxu0 0
  %1116 = vmatprep.mubr.bf16.mxu0 0
  %1117 = vmatmul.mubr.bf16.gmra.mrb[0].mxu0 %v1079
  %v1118 = vpop.f32.mrb[0].mxu0
  %v1119 = vadd.f32 0.0, %v1118
  %v1120 = vpop.f32.mrb[0].mxu0
  %v1121 = vpop.f32.mrb[0].mxu0
  %v1122 = vadd.f32 0.0, %v1121
  %v1123 = vpop.f32.mrb[0].mxu0
  %1124 = vmatprep.mubr.bf16.mxu0 0
  %1125 = vmatmul.mubr.bf16.gmra.mrb[0].mxu0 %v1082
  %v1126 = vpop.f32.mrb[0].mxu0
  %v1127 = vadd.f32 0.0, %v1126
  %v1128 = vpop.f32.mrb[0].mxu0
  %v1129 = vpop.f32.mrb[0].mxu0
  %v1130 = vpop.f32.mrb[0].mxu0
  %1131 = vdwg.mxu0
  %v1135 = vunpack.c.l.b16 %v613
  %v1136 = vunpack.c.l.b16 %v614
  %v1137 = vunpack.c.l.b16 %v615
  %v1138 = vpack.c.b16 %v1136, %v1135
  %v1139 = vpack.c.b16 %v1137, %v1137
  %1143 = vrot.lane.b32.xlu0 %v300, 64
  %v1144 = vpop.permute.xlu0 %1143
  %1145 = vrot.lane.b32.xlu0 %v304, 64
  %v1146 = vpop.permute.xlu0 %1145
  %1147 = vrot.lane.b32.xlu0 %v310, 64
  %v1148 = vpop.permute.xlu0 %1147
  %v1153 = vsel %vm53, %v1138, 0
  %v1156 = vsel %vm53, %v1139, 0
  %v1159 = vsel %vm60, %v617, 0
  %1161 = vmatprep.subr.bf16.mxu0 0
  %1162 = vmatpush1.bf16.msra.mxu0 %v616
  %1163 = vmatprep.subr.bf16.mxu0 0
  %1164 = vmatpush1.bf16.msra.mxu0 %v1159
  %1165 = vmatprep.subr.bf16.mxu0 0
  %1166 = vmatpush1.bf16.msra.mxu0 0
  %1167 = vmatprep.subr.bf16.mxu0 0
  %1168 = vmatpush1.bf16.msra.mxu0 0
  %1169 = vmatprep.subr.bf16.mxu0 0
  %1170 = vmatpush1.bf16.msra.mxu0 0
  %1171 = vmatprep.subr.bf16.mxu0 0
  %1172 = vmatpush1.bf16.msra.mxu0 0
  %1173 = vmatprep.subr.bf16.mxu0 0
  %1174 = vmatpush1.bf16.msra.mxu0 0
  %1175 = vmatprep.subr.bf16.mxu0 0
  %1176 = vmatpush1.bf16.msra.mxu0 0
  %1177 = vmatprep.subr.bf16.mxu0 0
  %1178 = vmatpush1.bf16.msra.mxu0 0
  %1179 = vmatprep.subr.bf16.mxu0 0
  %1180 = vmatpush1.bf16.msra.mxu0 0
  %1181 = vmatprep.subr.bf16.mxu0 0
  %1182 = vmatpush1.bf16.msra.mxu0 0
  %1183 = vmatprep.subr.bf16.mxu0 0
  %1184 = vmatpush1.bf16.msra.mxu0 0
  %1185 = vmatprep.subr.bf16.mxu0 0
  %1186 = vmatpush1.bf16.msra.mxu0 0
  %1187 = vmatprep.subr.bf16.mxu0 0
  %1188 = vmatpush1.bf16.msra.mxu0 0
  %1189 = vmatprep.subr.bf16.mxu0 0
  %1190 = vmatpush1.bf16.msra.mxu0 0
  %1191 = vmatprep.subr.bf16.mxu0 0
  %1192 = vmatpush1.bf16.msra.mxu0 0
  %1193 = vmatprep.mubr.bf16.mxu0 0
  %1194 = vmatmul.mubr.bf16.gmra.mrb[0].mxu0 %v1153
  %v1195 = vpop.f32.mrb[0].mxu0
  %v1196 = vadd.f32 %v1144, %v1195
  %v1197 = vpop.f32.mrb[0].mxu0
  %v1198 = vpop.f32.mrb[0].mxu0
  %v1199 = vadd.f32 %v1146, %v1198
  %v1200 = vpop.f32.mrb[0].mxu0
  %1201 = vmatprep.mubr.bf16.mxu0 0
  %1202 = vmatmul.mubr.bf16.gmra.mrb[0].mxu0 %v1156
  %v1203 = vpop.f32.mrb[0].mxu0
  %v1204 = vadd.f32 %v1148, %v1203
  %v1205 = vpop.f32.mrb[0].mxu0
  %v1206 = vpop.f32.mrb[0].mxu0
  %v1207 = vpop.f32.mrb[0].mxu0
  %1208 = vdwg.mxu0
  %v1209 = vadd.f32 %v1196, %v1119
  %v1210 = vadd.f32 %v1199, %v1122
  %v1211 = vadd.f32 %v1204, %v1127
  %v1212 = vld [vmem:[%s7 + $0x6a] sm:$0x1]
  %v1213 = vlaneseq
  %v1214 = vshrl.u32 %v1213, 7
  %v1215 = vsub.s32 0, %v1214
  %v1216 = vrot.slane %v1212, %v1215
  %v1217 = vadd.f32 %v1209, %v1216
  %v1218 = vadd.f32 %v1210, %v1216
  %v1219 = vmul.f32 %v1217, 0.5
  %v1220 = vmul.f32 %v1218, 0.5
  %v1221 = vld [vmem:[%s7 + $0x6b] sm:$0x1]
  %v1222 = vlaneseq
  %v1223 = vshrl.u32 %v1222, 7
  %v1224 = vsub.s32 0, %v1223
  %v1225 = vrot.slane %v1221, %v1224
  %v1226 = vadd.f32 %v1211, %v1225
  %v1227 = vmul.f32 %v1226, 0.5
  %v1228 = vld [vmem:[%s7 + $0x20] sm:$0xff]
  %v1229 = vld [vmem:[%s7 + $0x28] sm:$0xff]
  %v1230 = vld [vmem:[%s7 + $0x30] sm:$0xff]
  %v1231 = vld [vmem:[%s7 + $0x38] sm:$0xff]
  %v1232 = vld [vmem:[%s7 + $0x6c] sm:$0x1]
  %v1233 = vsel %vm524, %v1219, 0.0
  %v1234 = vsel %vm524, %v1220, 0.0
  %v1235 = vadd.f32 %v1233, %v1234
  %v1236 = vrot.slane %v1235, 4
  %v1237 = vadd.f32 %v1235, %v1236
  %v1238 = vrot.slane %v1237, 2
  %v1239 = vadd.f32 %v1237, %v1238
  %v1240 = vrot.slane %v1239, 1
  %v1241 = vadd.f32 %v1239, %v1240
  %v1242 = vmul.f32 %v1241, 0.0625
  %v1244 = vsel %vm524, %v1242, 0
  %1246 = vmatprep.subr.mxu0 0.0
  %1247 = vmatpush1.msra.mxu0 %v1228
  %1248 = vmatprep.subr.mxu0 0.0
  %1249 = vmatpush1.msra.mxu0 %v1229
  %1250 = vmatprep.subr.mxu0 0.0
  %1251 = vmatpush1.msra.mxu0 %v1230
  %1252 = vmatprep.subr.mxu0 0.0
  %1253 = vmatpush1.msra.mxu0 %v1231
  %1254 = vmatprep.subr.mxu0 0.0
  %1255 = vmatpush1.msra.mxu0 0.0
  %1256 = vmatprep.subr.mxu0 0.0
  %1257 = vmatpush1.msra.mxu0 0.0
  %1258 = vmatprep.subr.mxu0 0.0
  %1259 = vmatpush1.msra.mxu0 0.0
  %1260 = vmatprep.subr.mxu0 0.0
  %1261 = vmatpush1.msra.mxu0 0.0
  %1262 = vmatprep.subr.mxu0 0.0
  %1263 = vmatpush1.msra.mxu0 0.0
  %1264 = vmatprep.subr.mxu0 0.0
  %1265 = vmatpush1.msra.mxu0 0.0
  %1266 = vmatprep.subr.mxu0 0.0
  %1267 = vmatpush1.msra.mxu0 0.0
  %1268 = vmatprep.subr.mxu0 0.0
  %1269 = vmatpush1.msra.mxu0 0.0
  %1270 = vmatprep.subr.mxu0 0.0
  %1271 = vmatpush1.msra.mxu0 0.0
  %1272 = vmatprep.subr.mxu0 0.0
  %1273 = vmatpush1.msra.mxu0 0.0
  %1274 = vmatprep.subr.mxu0 0.0
  %1275 = vmatpush1.msra.mxu0 0.0
  %1276 = vmatprep.subr.mxu0 0.0
  %1277 = vmatpush1.msra.mxu0 0.0
  %1278 = vmatprep.subr.mxu0 0.0
  %1279 = vmatpush1.msra.mxu0 0.0
  %1280 = vmatprep.subr.mxu0 0.0
  %1281 = vmatpush1.msra.mxu0 0.0
  %1282 = vmatprep.subr.mxu0 0.0
  %1283 = vmatpush1.msra.mxu0 0.0
  %1284 = vmatprep.subr.mxu0 0.0
  %1285 = vmatpush1.msra.mxu0 0.0
  %1286 = vmatprep.subr.mxu0 0.0
  %1287 = vmatpush1.msra.mxu0 0.0
  %1288 = vmatprep.subr.mxu0 0.0
  %1289 = vmatpush1.msra.mxu0 0.0
  %1290 = vmatprep.subr.mxu0 0.0
  %1291 = vmatpush1.msra.mxu0 0.0
  %1292 = vmatprep.subr.mxu0 0.0
  %1293 = vmatpush1.msra.mxu0 0.0
  %1294 = vmatprep.subr.mxu0 0.0
  %1295 = vmatpush1.msra.mxu0 0.0
  %1296 = vmatprep.subr.mxu0 0.0
  %1297 = vmatpush1.msra.mxu0 0.0
  %1298 = vmatprep.subr.mxu0 0.0
  %1299 = vmatpush1.msra.mxu0 0.0
  %1300 = vmatprep.subr.mxu0 0.0
  %1301 = vmatpush1.msra.mxu0 0.0
  %1302 = vmatprep.subr.mxu0 0.0
  %1303 = vmatpush1.msra.mxu0 0.0
  %1304 = vmatprep.subr.mxu0 0.0
  %1305 = vmatpush1.msra.mxu0 0.0
  %1306 = vmatprep.subr.mxu0 0.0
  %1307 = vmatpush1.msra.mxu0 0.0
  %1308 = vmatprep.subr.mxu0 0.0
  %1309 = vmatpush1.msra.mxu0 0.0
  %1310 = vmatprep.mubr.f32.mxu0 0.0
  %1311 = vmatmul.mubr.f32.gmra.mrb[0].mxu0 %v1244
  %v1312 = vpop.f32.mrb[0].mxu0
  %v1313 = vadd.f32 %v1232, %v1312
  %v1314 = vpop.f32.mrb[0].mxu0
  %1315 = vdwg.mxu0
  %v1316 = vlaneseq
  %v1317 = vshrl.u32 %v1316, 7
  %v1318 = vsub.s32 0, %v1317
  %v1319 = vrot.slane %v1313, %v1318
  %v1320 = vmul.f32 %v1219, %v1319
  %v1321 = vmul.f32 %v1220, %v1319
  %v1322 = vsel %vm524, %v1320, 0.0
  %1323 = vadd.xlane.f32.xlu0 %v1322
  %v1324 = vpop.xlane.xlu0 %1323
  %v1325 = vsel %vm524, %v1321, 0.0
  %1326 = vadd.xlane.f32.xlu0 %v1325
  %v1327 = vpop.xlane.xlu0 %1326
  %1329 = vrot.lane.b32.xlu0 %v1319, 32
  %v1330 = vpop.permute.xlu0 %1329
  %v1332 = vmul.f32 %v1219, %v1330
  %v1333 = vmul.f32 %v1220, %v1330
  %1336 = vrot.lane.b32.xlu0 %v1332, 96
  %v1337 = vpop.permute.xlu0 %1336
  %1338 = vrot.lane.b32.xlu0 %v1333, 96
  %v1339 = vpop.permute.xlu0 %1338
  %v1342 = vsel %vm524, %v1337, 0.0
  %1343 = vadd.xlane.f32.xlu0 %v1342
  %v1344 = vpop.xlane.xlu0 %1343
  %v1345 = vsel %vm524, %v1339, 0.0
  %1346 = vadd.xlane.f32.xlu0 %v1345
  %v1347 = vpop.xlane.xlu0 %1346
  %v1348 = vmin.f32 %v1324, 0.0
  %v1349 = vmin.f32 %v1327, 0.0
  %v1350 = vand.u32 2147483647, %v1324
  %v1351 = vand.u32 2147483647, %v1327
  %v1352 = vsub.f32 0.0, %v1350
  %v1353 = vsub.f32 0.0, %v1351
  %v1354 = vmul.f32 %v1352, 1.442695
  %v1355 = vpow.pop %v1354
  %v1356 = vmul.f32 %v1353, 1.442695
  %v1357 = vpow.pop %v1356
  %v1358 = vadd.f32 %v1355, 1.0
  %v1359 = vlog2.pop %v1358
  %v1360 = vmul.f32 %v1359, 0.6931472
  %v1361 = vmul.f32 -0.5, %v1355
  %v1362 = vadd.f32 %v1361, 1.0
  %v1363 = vmul.f32 %v1362, %v1355
  %v1364 = vand.u32 2147483647, %v1355
  %vm1365 = vcmp.lt.f32.partialorder %v1364, 0.0004427343
  %v1366 = vsel %vm1365, %v1363, %v1360
  %v1367 = vadd.f32 %v1357, 1.0
  %v1368 = vlog2.pop %v1367
  %v1369 = vmul.f32 %v1368, 0.6931472
  %v1370 = vmul.f32 -0.5, %v1357
  %v1371 = vadd.f32 %v1370, 1.0
  %v1372 = vmul.f32 %v1371, %v1357
  %v1373 = vand.u32 2147483647, %v1357
  %vm1374 = vcmp.lt.f32.partialorder %v1373, 0.0004427343
  %v1375 = vsel %vm1374, %v1372, %v1369
  %v1376 = vsub.f32 %v1348, %v1366
  %v1377 = vsub.f32 %v1349, %v1375
  %v1378 = vadd.f32 %v1376, %v1377
  %v1379 = vrot.slane %v1378, 4
  %v1380 = vadd.f32 %v1378, %v1379
  %v1381 = vrot.slane %v1380, 2
  %v1382 = vadd.f32 %v1380, %v1381
  %v1383 = vrot.slane %v1382, 1
  %v1384 = vadd.f32 %v1382, %v1383
  %v1385 = vrcp.pop 16.0
  %v1386 = vmul.f32 %v1384, %v1385
  %v1387 = vsub.f32 0.0, %v1386
  %v1388 = vsub.f32 0.0, %v1344
  %v1389 = vsub.f32 0.0, %v1347
  %v1390 = vmin.f32 %v1388, 0.0
  %v1391 = vmin.f32 %v1389, 0.0
  %v1392 = vand.u32 2147483647, %v1388
  %v1393 = vand.u32 2147483647, %v1389
  %v1394 = vsub.f32 0.0, %v1392
  %v1395 = vsub.f32 0.0, %v1393
  %v1396 = vmul.f32 %v1394, 1.442695
  %v1397 = vpow.pop %v1396
  %v1398 = vmul.f32 %v1395, 1.442695
  %v1399 = vpow.pop %v1398
  %v1400 = vadd.f32 %v1397, 1.0
  %v1401 = vlog2.pop %v1400
  %v1402 = vmul.f32 %v1401, 0.6931472
  %v1403 = vmul.f32 -0.5, %v1397
  %v1404 = vadd.f32 %v1403, 1.0
  %v1405 = vmul.f32 %v1404, %v1397
  %v1406 = vand.u32 2147483647, %v1397
  %vm1407 = vcmp.lt.f32.partialorder %v1406, 0.0004427343
  %v1408 = vsel %vm1407, %v1405, %v1402
  %v1409 = vadd.f32 %v1399, 1.0
  %v1410 = vlog2.pop %v1409
  %v1411 = vmul.f32 %v1410, 0.6931472
  %v1412 = vmul.f32 -0.5, %v1399
  %v1413 = vadd.f32 %v1412, 1.0
  %v1414 = vmul.f32 %v1413, %v1399
  %v1415 = vand.u32 2147483647, %v1399
  %vm1416 = vcmp.lt.f32.partialorder %v1415, 0.0004427343
  %v1417 = vsel %vm1416, %v1414, %v1411
  %v1418 = vsub.f32 %v1390, %v1408
  %v1419 = vsub.f32 %v1391, %v1417
  %v1420 = vadd.f32 %v1418, %v1419
  %v1421 = vrot.slane %v1420, 4
  %v1422 = vadd.f32 %v1420, %v1421
  %v1423 = vrot.slane %v1422, 2
  %v1424 = vadd.f32 %v1422, %v1423
  %v1425 = vrot.slane %v1424, 1
  %v1426 = vadd.f32 %v1424, %v1425
  %v1427 = vmul.f32 %v1426, %v1385
  %v1428 = vsub.f32 %v1387, %v1427
  %v1429 = vld [vmem:[%s7 + $0x40] sm:$0xff]
  %v1430 = vld [vmem:[%s7 + $0x48] sm:$0xff]
  %v1431 = vld [vmem:[%s7 + $0x50] sm:$0xff]
  %v1432 = vld [vmem:[%s7 + $0x58] sm:$0xff]
  %v1433 = vld [vmem:[%s7 + $0x6d] sm:$0x1]
  %v1434 = vsel %vm524, %v1227, 0.0
  %v1435 = vrot.slane %v1434, 4
  %v1436 = vadd.f32 %v1434, %v1435
  %v1437 = vrot.slane %v1436, 2
  %v1438 = vadd.f32 %v1436, %v1437
  %v1439 = vrot.slane %v1438, 1
  %v1440 = vadd.f32 %v1438, %v1439
  %v1441 = vmul.f32 %v1440, 0.125
  %v1443 = vsel %vm524, %v1441, 0
  %1445 = vmatprep.subr.mxu0 0.0
  %1446 = vmatpush1.msra.mxu0 %v1429
  %1447 = vmatprep.subr.mxu0 0.0
  %1448 = vmatpush1.msra.mxu0 %v1430
  %1449 = vmatprep.subr.mxu0 0.0
  %1450 = vmatpush1.msra.mxu0 %v1431
  %1451 = vmatprep.subr.mxu0 0.0
  %1452 = vmatpush1.msra.mxu0 %v1432
  %1453 = vmatprep.subr.mxu0 0.0
  %1454 = vmatpush1.msra.mxu0 0.0
  %1455 = vmatprep.subr.mxu0 0.0
  %1456 = vmatpush1.msra.mxu0 0.0
  %1457 = vmatprep.subr.mxu0 0.0
  %1458 = vmatpush1.msra.mxu0 0.0
  %1459 = vmatprep.subr.mxu0 0.0
  %1460 = vmatpush1.msra.mxu0 0.0
  %1461 = vmatprep.subr.mxu0 0.0
  %1462 = vmatpush1.msra.mxu0 0.0
  %1463 = vmatprep.subr.mxu0 0.0
  %1464 = vmatpush1.msra.mxu0 0.0
  %1465 = vmatprep.subr.mxu0 0.0
  %1466 = vmatpush1.msra.mxu0 0.0
  %1467 = vmatprep.subr.mxu0 0.0
  %1468 = vmatpush1.msra.mxu0 0.0
  %1469 = vmatprep.subr.mxu0 0.0
  %1470 = vmatpush1.msra.mxu0 0.0
  %1471 = vmatprep.subr.mxu0 0.0
  %1472 = vmatpush1.msra.mxu0 0.0
  %1473 = vmatprep.subr.mxu0 0.0
  %1474 = vmatpush1.msra.mxu0 0.0
  %1475 = vmatprep.subr.mxu0 0.0
  %1476 = vmatpush1.msra.mxu0 0.0
  %1477 = vmatprep.subr.mxu0 0.0
  %1478 = vmatpush1.msra.mxu0 0.0
  %1479 = vmatprep.subr.mxu0 0.0
  %1480 = vmatpush1.msra.mxu0 0.0
  %1481 = vmatprep.subr.mxu0 0.0
  %1482 = vmatpush1.msra.mxu0 0.0
  %1483 = vmatprep.subr.mxu0 0.0
  %1484 = vmatpush1.msra.mxu0 0.0
  %1485 = vmatprep.subr.mxu0 0.0
  %1486 = vmatpush1.msra.mxu0 0.0
  %1487 = vmatprep.subr.mxu0 0.0
  %1488 = vmatpush1.msra.mxu0 0.0
  %1489 = vmatprep.subr.mxu0 0.0
  %1490 = vmatpush1.msra.mxu0 0.0
  %1491 = vmatprep.subr.mxu0 0.0
  %1492 = vmatpush1.msra.mxu0 0.0
  %1493 = vmatprep.subr.mxu0 0.0
  %1494 = vmatpush1.msra.mxu0 0.0
  %1495 = vmatprep.subr.mxu0 0.0
  %1496 = vmatpush1.msra.mxu0 0.0
  %1497 = vmatprep.subr.mxu0 0.0
  %1498 = vmatpush1.msra.mxu0 0.0
  %1499 = vmatprep.subr.mxu0 0.0
  %1500 = vmatpush1.msra.mxu0 0.0
  %1501 = vmatprep.subr.mxu0 0.0
  %1502 = vmatpush1.msra.mxu0 0.0
  %1503 = vmatprep.subr.mxu0 0.0
  %1504 = vmatpush1.msra.mxu0 0.0
  %1505 = vmatprep.subr.mxu0 0.0
  %1506 = vmatpush1.msra.mxu0 0.0
  %1507 = vmatprep.subr.mxu0 0.0
  %1508 = vmatpush1.msra.mxu0 0.0
  %1509 = vmatprep.mubr.f32.mxu0 0.0
  %1510 = vmatmul.mubr.f32.gmra.mrb[0].mxu0 %v1443
  %v1511 = vpop.f32.mrb[0].mxu0
  %v1512 = vadd.f32 %v1433, %v1511
  %v1513 = vpop.f32.mrb[0].mxu0
  %1514 = vdwg.mxu0
  %v1515 = vlaneseq
  %v1516 = vshrl.u32 %v1515, 7
  %v1517 = vsub.s32 0, %v1516
  %v1518 = vrot.slane %v1512, %v1517
  %v1519 = vmul.f32 %v1227, %v1518
  %v1520 = vsel %vm524, %v1519, 0.0
  %1521 = vadd.xlane.f32.xlu0 %v1520
  %v1522 = vpop.xlane.xlu0 %1521
  %1524 = vrot.lane.b32.xlu0 %v1518, 32
  %v1525 = vpop.permute.xlu0 %1524
  %v1527 = vmul.f32 %v1227, %v1525
  %1529 = vrot.lane.b32.xlu0 %v1527, 96
  %v1530 = vpop.permute.xlu0 %1529
  %v1532 = vsel %vm524, %v1530, 0.0
  %1533 = vadd.xlane.f32.xlu0 %v1532
  %v1534 = vpop.xlane.xlu0 %1533
  %v1535 = vmin.f32 %v1522, 0.0
  %v1536 = vand.u32 2147483647, %v1522
  %v1537 = vsub.f32 0.0, %v1536
  %v1538 = vmul.f32 %v1537, 1.442695
  %v1539 = vpow.pop %v1538
  %v1540 = vadd.f32 %v1539, 1.0
  %v1541 = vlog2.pop %v1540
  %v1542 = vmul.f32 %v1541, 0.6931472
  %v1543 = vmul.f32 -0.5, %v1539
  %v1544 = vadd.f32 %v1543, 1.0
  %v1545 = vmul.f32 %v1544, %v1539
  %v1546 = vand.u32 2147483647, %v1539
  %vm1547 = vcmp.lt.f32.partialorder %v1546, 0.0004427343
  %v1548 = vsel %vm1547, %v1545, %v1542
  %v1549 = vsub.f32 %v1535, %v1548
  %v1550 = vrot.slane %v1549, 4
  %v1551 = vadd.f32 %v1549, %v1550
  %v1552 = vrot.slane %v1551, 2
  %v1553 = vadd.f32 %v1551, %v1552
  %v1554 = vrot.slane %v1553, 1
  %v1555 = vadd.f32 %v1553, %v1554
  %v1556 = vrcp.pop 8.0
  %v1557 = vmul.f32 %v1555, %v1556
  %v1558 = vsub.f32 0.0, %v1557
  %v1559 = vsub.f32 0.0, %v1534
  %v1560 = vmin.f32 %v1559, 0.0
  %v1561 = vand.u32 2147483647, %v1559
  %v1562 = vsub.f32 0.0, %v1561
  %v1563 = vmul.f32 %v1562, 1.442695
  %v1564 = vpow.pop %v1563
  %v1565 = vadd.f32 %v1564, 1.0
  %v1566 = vlog2.pop %v1565
  %v1567 = vmul.f32 %v1566, 0.6931472
  %v1568 = vmul.f32 -0.5, %v1564
  %v1569 = vadd.f32 %v1568, 1.0
  %v1570 = vmul.f32 %v1569, %v1564
  %v1571 = vand.u32 2147483647, %v1564
  %vm1572 = vcmp.lt.f32.partialorder %v1571, 0.0004427343
  %v1573 = vsel %vm1572, %v1570, %v1567
  %v1574 = vsub.f32 %v1560, %v1573
  %v1575 = vrot.slane %v1574, 4
  %v1576 = vadd.f32 %v1574, %v1575
  %v1577 = vrot.slane %v1576, 2
  %v1578 = vadd.f32 %v1576, %v1577
  %v1579 = vrot.slane %v1578, 1
  %v1580 = vadd.f32 %v1578, %v1579
  %v1581 = vmul.f32 %v1580, %v1556
  %v1582 = vsub.f32 %v1558, %v1581
  %v1583 = vadd.f32 %v1428, %v1582
  %1584 = vst.msk [vmem:[%s8] sm:$0xff] %vm524, %v1219
  %1585 = vst.msk [vmem:[%s8 + $0x8] sm:$0xff] %vm524, %v1220
  %1586 = vst.msk [vmem:[%s8 + $0x10] sm:$0xff] %vm524, %v1227
  %v1587 = vadd.f32 %v1583, 0.0
  %1588 = vst.msk [vmem:[%s8 + $0x18] sm:$0xff] %vm524, %v1587
  // Predicated region
  $region34: #{_lambda_.1} parent=0 // pred_check
    _
  $region35: #{_lambda_.1} parent=0 // pred_check_branch
    %1590 = sbr.rel (0) target = $region37
  $region36: #{_lambda_.1} parent=0 // pred_region
    _
  $region37: #{_lambda_.1} parent=0 // pred_fallthru
    _
  // Predicated region
  $region38: #{_lambda_.1} parent=0 // pred_check
    _
  $region39: #{_lambda_.1} parent=0 // pred_check_branch
    %1592 = sbr.rel (0) target = $region41
  $region40: #{_lambda_.1} parent=0 // pred_region
    _
  $region41: #{_lambda_.1} parent=0 // pred_fallthru
    _

</llo_original>
